<compile_context>
chip_gen: v7x
topology: tpu7x:2x2x1
jax: 0.10.0
libtpu: 0.0.40
codegen_flags: <defaults>
</compile_context>

<pallas_src>
import math
import jax
import jax.numpy as jnp
from jax.experimental import pallas as pl
from jax.experimental.pallas import tpu as pltpu

SELU_ALPHA = 1.6732632423543772
SELU_SCALE = 1.0507009873554805
LOG_2PI = math.log(2.0 * math.pi)
LANE = 128


def _selu(x):
    return SELU_SCALE * jnp.where(x > 0, x, SELU_ALPHA * (jnp.exp(x) - 1.0))


def _round_up(x, m):
    return ((x + m - 1) // m) * m


def _cdiv(a, b):
    return -(-a // b)


# ----------------------------------------------------------------------------
# Fused evaluate kernel factory.
#   chains (in weight order): enc trunk, 1..2 head chains (from enc_out), then
#   state_critic (from states).  Every head / state-critic chain ends in the
#   same PACK_W-wide packed output and the results are summed.
# ----------------------------------------------------------------------------
def _make_eval_kernel(enc_flags, head_flags_list, scritic_flags):
    enc_flags = tuple(enc_flags)
    head_flags_list = tuple(tuple(f) for f in head_flags_list)
    scritic_flags = tuple(scritic_flags)

    starts = []
    c = 0
    for fl in (enc_flags,) + head_flags_list + (scritic_flags,):
        starts.append(c)
        c += len(fl)

    def kernel(obs_ref, st_ref, act_ref, isg_ref, nh_ref, *refs):
        out_ref = refs[-1]
        wb = refs[:-1]

        def chain(h, start, flags):
            for i, f in enumerate(flags):
                w = wb[2 * (start + i)][...]
                b = wb[2 * (start + i) + 1][...]
                h = jnp.dot(h, w, preferred_element_type=jnp.float32) + b
                if f:
                    h = _selu(h)
            return h

        # Shared trunk: encoder stand-in + ac_enc (SELU after every layer).
        enc_out = chain(obs_ref[...], starts[0], enc_flags)

        # Packed actor+critic head (or two separate heads when packing is not
        # possible): mean lands in cols [0, A), obs_value in col A+1.
        head = chain(enc_out, starts[1], head_flags_list[0])
        for ci in range(1, len(head_flags_list)):
            head = head + chain(enc_out, starts[1 + ci], head_flags_list[ci])

        # State critic (value in col A+2, zeros elsewhere).
        val = chain(st_ref[...], starts[1 + len(head_flags_list)], scritic_flags)

        # MVN quadratic form; inv_sigma is zero on every lane >= A, which also
        # masks the obs_value column of `head` out of the residual.
        z = (act_ref[...] - head) * isg_ref[...]
        quad = jnp.sum(z * z, axis=-1, keepdims=True)            # (R, 1)

        # Single lane-dense packed store: mean + obs_value + value + (-0.5*quad)
        # at its dedicated column (nh_ref is a precomputed -0.5 one-hot).
        out_ref[...] = head + val + quad * nh_ref[...]

    return kernel


# ----------------------------------------------------------------------------
# Parameter construction (mirrors ActorCriticLMFull.__init__).
# ----------------------------------------------------------------------------
def _linear(key, d_in, d_out):
    kw, _ = jax.random.split(key)
    w = jax.random.normal(kw, (d_in, d_out), jnp.float32) / jnp.sqrt(jnp.float32(d_in))
    b = jnp.zeros((1, d_out), jnp.float32)
    return w, b


def build_params(key, obs_dim, state_dim, action_dim, cfg):
    H = cfg["hidden_states_shape"]
    enc_hid = cfg["enc_hid_sizes"]
    pi_hid = cfg["pi_hid_sizes"]
    vf_hid = cfg["vf_hid_sizes"]
    svf_hid = cfg["state_vf_hid_sizes"]

    chain_dims = {
        # encoder stand-in (obs -> H) followed by the ac_enc chain.
        "enc": [obs_dim, H, enc_hid[0]] + enc_hid[1:] + [pi_hid[0]],
        "actor": pi_hid + [action_dim],
        "critic": vf_hid + [1],
        "scritic": [state_dim] + svf_hid + [1],
    }
    n_layers = sum(len(d) - 1 for d in chain_dims.values())
    keys = iter(jax.random.split(key, n_layers))

    params = {}
    for name, dims in chain_dims.items():
        ws, bs = [], []
        for a, b in zip(dims[:-1], dims[1:]):
            w, bb = _linear(next(keys), a, b)
            ws.append(w)
            bs.append(bb)
        params[f"{name}_w"], params[f"{name}_b"] = ws, bs
        if name == "enc":
            params["enc_act"] = [True] * len(ws)          # act after every linear
        else:
            params[f"{name}_act"] = [True] * (len(ws) - 1) + [False]

    params["log_std"] = jnp.full((action_dim,), math.log(cfg["initial_std"]), jnp.float32)
    params["clip_std"] = cfg.get("clip_std", False)
    params["clip_std_lower"] = cfg.get("clip_std_lower", -20.0)
    params["clip_std_upper"] = cfg.get("clip_std_upper", 2.0)
    return params


# ----------------------------------------------------------------------------
# One-time parameter padding / packing (off the hot path).
# ----------------------------------------------------------------------------
def pad_params(params):
    """Zero-pad every feature dim to a multiple of 128 and pack the actor /
    critic chains block-diagonally.  The packed-column scheme relies on
    (a) last layers of actor/critic/state_critic having NO activation and
    (b) padded biases being exactly zero outside their target columns, so that
    SELU(0)=0 keeps padded lanes at zero through every chain."""
    A = params["log_std"].shape[0]
    pack_w = _round_up(A + 3, LANE)
    col_quad, col_obs_v, col_val = A, A + 1, A + 2

    actor_act = list(params["actor_act"])
    critic_act = list(params["critic_act"])
    scritic_act = list(params["scritic_act"])
    assert not actor_act[-1] and not critic_act[-1] and not scritic_act[-1], (
        "packed scalar-column scheme requires no activation on head last layers")
    assert col_val < pack_w

    def pad_w(w, din_p, dout_p, col_off):
        out = jnp.zeros((din_p, dout_p), jnp.float32)
        return out.at[: w.shape[0], col_off: col_off + w.shape[1]].set(w)

    def pad_b(b, dout_p, col_off):
        out = jnp.zeros((1, dout_p), jnp.float32)
        return out.at[:, col_off: col_off + b.shape[1]].set(b)

    def pad_chain(ws, bs, last_dout=None, last_off=0):
        pws, pbs = [], []
        nl = len(ws)
        for i, (w, b) in enumerate(zip(ws, bs)):
            din_p = _round_up(w.shape[0], LANE)
            if i == nl - 1 and last_dout is not None:
                dout_p, off = last_dout, last_off
            else:
                dout_p, off = _round_up(w.shape[1], LANE), 0
            pws.append(pad_w(w, din_p, dout_p, off))
            pbs.append(pad_b(b, dout_p, off))
        return pws, pbs

    pp = dict(params)
    pp["pack_w"] = pack_w
    pp["col_quad"], pp["col_obs_value"], pp["col_value"] = col_quad, col_obs_v, col_val

    # Shared trunk (encoder stand-in + ac_enc): every feature dim -> 128.
    pp["enc_w"], pp["enc_b"] = pad_chain(params["enc_w"], params["enc_b"])

    aw, ab = params["actor_w"], params["actor_b"]
    cw, cb = params["critic_w"], params["critic_b"]
    if len(aw) == len(cw) and tuple(actor_act) == tuple(critic_act):
        # Block-diagonal packing of actor + critic into ONE chain:
        #   layer 0: output-concat (both read enc_out),
        #   middle layers: block-diagonal,
        #   last layer: mean -> cols [0, A), obs_value -> col A+1.
        hws, hbs = [], []
        a_in_off, c_in_off = 0, 0
        din_p = _round_up(aw[0].shape[0], LANE)
        L = len(aw)
        for i in range(L):
            if i == L - 1:
                dout_p = pack_w
                a_out_off, c_out_off = 0, col_obs_v
            else:
                a_out_off, c_out_off = 0, aw[i].shape[1]
                dout_p = _round_up(aw[i].shape[1] + cw[i].shape[1], LANE)
            w = jnp.zeros((din_p, dout_p), jnp.float32)
            w = w.at[a_in_off:a_in_off + aw[i].shape[0],
                     a_out_off:a_out_off + aw[i].shape[1]].set(aw[i])
            w = w.at[c_in_off:c_in_off + cw[i].shape[0],
                     c_out_off:c_out_off + cw[i].shape[1]].set(cw[i])
            b = jnp.zeros((1, dout_p), jnp.float32)
            b = b.at[:, a_out_off:a_out_off + ab[i].shape[1]].set(ab[i])
            b = b.at[:, c_out_off:c_out_off + cb[i].shape[1]].set(cb[i])
            hws.append(w)
            hbs.append(b)
            a_in_off, c_in_off, din_p = a_out_off, c_out_off, dout_p
        pp["head_w"], pp["head_b"] = [hws], [hbs]
        pp["head_act"] = [tuple(actor_act)]
    else:
        # Fallback: two separate head chains writing disjoint packed columns.
        paw, pab = pad_chain(aw, ab, last_dout=pack_w, last_off=0)
        pcw, pcb = pad_chain(cw, cb, last_dout=pack_w, last_off=col_obs_v)
        pp["head_w"], pp["head_b"] = [paw, pcw], [pab, pcb]
        pp["head_act"] = [tuple(actor_act), tuple(critic_act)]

    pp["scritic_w"], pp["scritic_b"] = pad_chain(params["scritic_w"], params["scritic_b"],
                                                 last_dout=pack_w, last_off=col_val)
    return pp


# ----------------------------------------------------------------------------
# evaluate(observations, states, actions) — fused Pallas forward.
# ----------------------------------------------------------------------------
def evaluate(pp, observations, states, actions, block_rows=1024):
    B, T, obs_dim = observations.shape
    state_dim = states.shape[-1]
    A = actions.shape[-1]
    N = B * T

    obs = observations.reshape(N, obs_dim).astype(jnp.float32)
    st = states.reshape(N, state_dim).astype(jnp.float32)
    act = actions.reshape(N, A).astype(jnp.float32)

    obs_pad = pp["enc_w"][0].shape[0]
    state_pad = pp["scritic_w"][0].shape[0]
    pack_w = pp["pack_w"]
    cq, cov, cv = pp["col_quad"], pp["col_obs_value"], pp["col_value"]

    # Row tiling: large tiles amortize per-grid-step pipeline overhead and the
    # per-layer MXU weight push; steer toward an EVEN step count (>1) so the
    # "parallel" row axis balances across v7x's two TensorCores.
    R = min(block_rows, _round_up(N, 8))
    steps = _cdiv(N, R)
    if steps % 2 == 1 and N > 8:
        R = _round_up(_cdiv(N, steps + 1), 8)
    N_pad = _round_up(N, R)

    def pad2d(x, rows, cols):
        return jnp.pad(x, ((0, rows - x.shape[0]), (0, cols - x.shape[1])))

    obs_p = pad2d(obs, N_pad, obs_pad)
    st_p = pad2d(st, N_pad, state_pad)
    act_p = pad2d(act, N_pad, pack_w)

    # Distribution constants hoisted out of the kernel.  log_std is
    # batch-constant, so the MVN entropy is a single data-independent scalar.
    log_std = pp["log_std"].astype(jnp.float32)
    if pp["clip_std"]:
        log_std = jnp.clip(log_std, pp["clip_std_lower"], pp["clip_std_upper"])
    log_sigma = 2.0 * log_std                      # scale_tril = diag(std**2)
    sum_log_sigma = jnp.sum(log_sigma)
    inv_sigma = jnp.zeros((1, pack_w), jnp.float32).at[0, :A].set(1.0 / jnp.exp(log_sigma))
    neg_half = jnp.zeros((1, pack_w), jnp.float32).at[0, cq].set(-0.5)

    head_w = [w for ch in pp["head_w"] for w in ch]
    head_b = [b for ch in pp["head_b"] for b in ch]
    ws = pp["enc_w"] + head_w + pp["scritic_w"]
    bs = pp["enc_b"] + head_b + pp["scritic_b"]

    kernel = _make_eval_kernel(tuple(pp["enc_act"]), tuple(pp["head_act"]),
                               tuple(pp["scritic_act"]))

    in_specs = [
        pl.BlockSpec((R, obs_pad), lambda i: (i, 0)),
        pl.BlockSpec((R, state_pad), lambda i: (i, 0)),
        pl.BlockSpec((R, pack_w), lambda i: (i, 0)),
        pl.BlockSpec((1, pack_w), lambda i: (0, 0)),
        pl.BlockSpec((1, pack_w), lambda i: (0, 0)),
    ]
    args = [obs_p, st_p, act_p, inv_sigma, neg_half]
    for w, b in zip(ws, bs):
        in_specs.append(pl.BlockSpec(w.shape, lambda i: (0, 0)))
        in_specs.append(pl.BlockSpec(b.shape, lambda i: (0, 0)))
        args += [w, b]

    # Advisory cost estimate so XLA schedules the surrounding ops sensibly.
    flags = (tuple(pp["enc_act"])
             + tuple(f for fl in pp["head_act"] for f in fl)
             + tuple(pp["scritic_act"]))
    flops = int(sum(2 * N_pad * w.shape[0] * w.shape[1] for w in ws))
    trans = int(sum(N_pad * w.shape[1] for w, f in zip(ws, flags) if f))
    w_bytes = int(sum(4 * (int(w.size) + int(b.size)) for w, b in zip(ws, bs)))
    bytes_accessed = int(4 * N_pad * (obs_pad + state_pad + 2 * pack_w) + w_bytes)
    cost = pl.CostEstimate(flops=flops, transcendentals=trans,
                           bytes_accessed=bytes_accessed)

    out = pl.pallas_call(
        kernel,
        out_shape=jax.ShapeDtypeStruct((N_pad, pack_w), jnp.float32),
        grid=(N_pad // R,),
        in_specs=in_specs,
        out_specs=pl.BlockSpec((R, pack_w), lambda i: (i, 0)),
        compiler_params=pltpu.CompilerParams(
            dimension_semantics=("parallel",),
            vmem_limit_bytes=32 * 1024 * 1024),
        cost_estimate=cost,
    )(*args)

    actions_mean = out[:N, :A]
    logp = out[:N, cq] - sum_log_sigma - 0.5 * A * LOG_2PI
    obs_value = out[:N, cov:cov + 1]
    value = out[:N, cv:cv + 1]
    # Entropy of the MVN is data-independent (log_std is batch-constant).
    ent_const = 0.5 * A * (1.0 + LOG_2PI) + sum_log_sigma

    return (
        logp.reshape(B, T),                                      # actions_log_prob
        jnp.broadcast_to(ent_const, (B, T, 1)),                  # entropy.unsqueeze(-1)
        value.reshape(B, T, 1),                                  # state_critic value
        obs_value.reshape(B, T, 1),                              # critic value
        actions_mean.reshape(B, T, A),                           # actions_mean
        jnp.broadcast_to(log_std.reshape(1, 1, A), (B, T, A)),   # repeated log_std
    )


# ----------------------------------------------------------------------------
# Pure-JAX reference (same math, unpadded params) for correctness cross-check.
# ----------------------------------------------------------------------------
def _mlp_ref(x, ws, bs, flags):
    h = x
    for w, b, f in zip(ws, bs, flags):
        h = h @ w + b
        if f:
            h = _selu(h)
    return h


def evaluate_ref(params, observations, states, actions):
    B, T, _ = observations.shape
    A = actions.shape[-1]
    N = B * T
    obs = observations.reshape(N, -1)
    st = states.reshape(N, -1)
    act = actions.reshape(N, -1)
    out = _mlp_ref(obs, params["enc_w"], params["enc_b"], params["enc_act"])
    mean = _mlp_ref(out, params["actor_w"], params["actor_b"], params["actor_act"])
    obs_v = _mlp_ref(out, params["critic_w"], params["critic_b"], params["critic_act"])
    val = _mlp_ref(st, params["scritic_w"], params["scritic_b"], params["scritic_act"])
    log_std = params["log_std"]
    if params["clip_std"]:
        log_std = jnp.clip(log_std, params["clip_std_lower"], params["clip_std_upper"])
    log_sigma = 2.0 * log_std
    sigma = jnp.exp(log_sigma)
    z = (act - mean) / sigma
    logp = -0.5 * jnp.sum(z * z, -1) - jnp.sum(log_sigma) - 0.5 * A * LOG_2PI
    ent = jnp.full((N,), 0.5 * A * (1.0 + LOG_2PI)) + jnp.sum(log_sigma)
    return (logp.reshape(B, T), ent.reshape(B, T, 1), val.reshape(B, T, 1),
            obs_v.reshape(B, T, 1), mean.reshape(B, T, A),
            jnp.broadcast_to(log_std.reshape(1, 1, A), (B, T, A)))


if __name__ == "__main__":
    B, T = 2, 8
    OBS, STATE, ACT = 24, 20, 12
    cfg = {
        "hidden_states_shape": 32,
        "enc_hid_sizes": [32, 32],
        "pi_hid_sizes": [32, 32],
        "vf_hid_sizes": [32, 32],
        "state_vf_hid_sizes": [32, 32],
        "activation": "selu",
        "initial_std": 0.8,
        "clip_std": True,
        "clip_std_lower": -1.0,
        "clip_std_upper": 1.0,
    }

    key = jax.random.PRNGKey(0)
    kp, ko, ks, ka = jax.random.split(key, 4)
    params = build_params(kp, OBS, STATE, ACT, cfg)
    padded = pad_params(params)   # one-time lane padding / chain packing

    observations = jax.random.normal(ko, (B, T, OBS), jnp.float32)
    states = jax.random.normal(ks, (B, T, STATE), jnp.float32)
    actions = jax.random.normal(ka, (B, T, ACT), jnp.float32)

    eval_fn = jax.jit(lambda o, s, a: evaluate(padded, o, s, a))
    outs = jax.block_until_ready(eval_fn(observations, states, actions))

    refs = evaluate_ref(params, observations, states, actions)
    for o, r in zip(outs, refs):
        assert o.shape == r.shape, (o.shape, r.shape)
        assert jnp.allclose(o, r, rtol=1e-4, atol=1e-4), "mismatch vs reference"

    print("KERNEL_OK")
</pallas_src>

<mosaic_0001>
module attributes {stable_mosaic.version = 11 : i64} {
  func.func @kernel(%arg0: i32, %arg1: memref<8x128xf32, #tpu.memory_space<vmem>>, %arg2: memref<8x128xf32, #tpu.memory_space<vmem>>, %arg3: memref<8x128xf32, #tpu.memory_space<vmem>>, %arg4: memref<1x128xf32, #tpu.memory_space<vmem>>, %arg5: memref<1x128xf32, #tpu.memory_space<vmem>>, %arg6: memref<128x128xf32, #tpu.memory_space<vmem>>, %arg7: memref<1x128xf32, #tpu.memory_space<vmem>>, %arg8: memref<128x128xf32, #tpu.memory_space<vmem>>, %arg9: memref<1x128xf32, #tpu.memory_space<vmem>>, %arg10: memref<128x128xf32, #tpu.memory_space<vmem>>, %arg11: memref<1x128xf32, #tpu.memory_space<vmem>>, %arg12: memref<128x128xf32, #tpu.memory_space<vmem>>, %arg13: memref<1x128xf32, #tpu.memory_space<vmem>>, %arg14: memref<128x128xf32, #tpu.memory_space<vmem>>, %arg15: memref<1x128xf32, #tpu.memory_space<vmem>>, %arg16: memref<128x128xf32, #tpu.memory_space<vmem>>, %arg17: memref<1x128xf32, #tpu.memory_space<vmem>>, %arg18: memref<128x128xf32, #tpu.memory_space<vmem>>, %arg19: memref<1x128xf32, #tpu.memory_space<vmem>>, %arg20: memref<128x128xf32, #tpu.memory_space<vmem>>, %arg21: memref<1x128xf32, #tpu.memory_space<vmem>>, %arg22: memref<128x128xf32, #tpu.memory_space<vmem>>, %arg23: memref<1x128xf32, #tpu.memory_space<vmem>>, %arg24: memref<8x128xf32, #tpu.memory_space<vmem>>) attributes {dimension_semantics = [#tpu.dimension_semantics<parallel>], iteration_bounds = array<i64: 2>, scalar_prefetch = 0 : i64, scratch_operands = 0 : i64, tpu.core_type = #tpu.core_type<tc>, window_params = [{transform_indices = @transform_0, window_bounds = array<i64: 8, 128>}, {transform_indices = @transform_1, window_bounds = array<i64: 8, 128>}, {transform_indices = @transform_2, window_bounds = array<i64: 8, 128>}, {pipeline_mode = #tpu.pipeline_mode<synchronous>, transform_indices = @transform_3, window_bounds = array<i64: 1, 128>}, {pipeline_mode = #tpu.pipeline_mode<synchronous>, transform_indices = @transform_4, window_bounds = array<i64: 1, 128>}, {pipeline_mode = #tpu.pipeline_mode<synchronous>, transform_indices = @transform_5, window_bounds = array<i64: 128, 128>}, {pipeline_mode = #tpu.pipeline_mode<synchronous>, transform_indices = @transform_6, window_bounds = array<i64: 1, 128>}, {pipeline_mode = #tpu.pipeline_mode<synchronous>, transform_indices = @transform_7, window_bounds = array<i64: 128, 128>}, {pipeline_mode = #tpu.pipeline_mode<synchronous>, transform_indices = @transform_8, window_bounds = array<i64: 1, 128>}, {pipeline_mode = #tpu.pipeline_mode<synchronous>, transform_indices = @transform_9, window_bounds = array<i64: 128, 128>}, {pipeline_mode = #tpu.pipeline_mode<synchronous>, transform_indices = @transform_10, window_bounds = array<i64: 1, 128>}, {pipeline_mode = #tpu.pipeline_mode<synchronous>, transform_indices = @transform_11, window_bounds = array<i64: 128, 128>}, {pipeline_mode = #tpu.pipeline_mode<synchronous>, transform_indices = @transform_12, window_bounds = array<i64: 1, 128>}, {pipeline_mode = #tpu.pipeline_mode<synchronous>, transform_indices = @transform_13, window_bounds = array<i64: 128, 128>}, {pipeline_mode = #tpu.pipeline_mode<synchronous>, transform_indices = @transform_14, window_bounds = array<i64: 1, 128>}, {pipeline_mode = #tpu.pipeline_mode<synchronous>, transform_indices = @transform_15, window_bounds = array<i64: 128, 128>}, {pipeline_mode = #tpu.pipeline_mode<synchronous>, transform_indices = @transform_16, window_bounds = array<i64: 1, 128>}, {pipeline_mode = #tpu.pipeline_mode<synchronous>, transform_indices = @transform_17, window_bounds = array<i64: 128, 128>}, {pipeline_mode = #tpu.pipeline_mode<synchronous>, transform_indices = @transform_18, window_bounds = array<i64: 1, 128>}, {pipeline_mode = #tpu.pipeline_mode<synchronous>, transform_indices = @transform_19, window_bounds = array<i64: 128, 128>}, {pipeline_mode = #tpu.pipeline_mode<synchronous>, transform_indices = @transform_20, window_bounds = array<i64: 1, 128>}, {pipeline_mode = #tpu.pipeline_mode<synchronous>, transform_indices = @transform_21, window_bounds = array<i64: 128, 128>}, {pipeline_mode = #tpu.pipeline_mode<synchronous>, transform_indices = @transform_22, window_bounds = array<i64: 1, 128>}, {transform_indices = @transform_23, window_bounds = array<i64: 8, 128>}]} {
    %c0 = arith.constant 0 : index
    %c0_0 = arith.constant 0 : index
    %0 = vector.load %arg1[%c0, %c0_0] : memref<8x128xf32, #tpu.memory_space<vmem>>, vector<8x128xf32>
    %c0_1 = arith.constant 0 : index
    %c0_2 = arith.constant 0 : index
    %1 = vector.load %arg6[%c0_1, %c0_2] : memref<128x128xf32, #tpu.memory_space<vmem>>, vector<128x128xf32>
    %c0_3 = arith.constant 0 : index
    %c0_4 = arith.constant 0 : index
    %2 = vector.load %arg7[%c0_3, %c0_4] : memref<1x128xf32, #tpu.memory_space<vmem>>, vector<1x128xf32>
    %cst = arith.constant dense<0.000000e+00> : vector<8x128xf32>
    %3 = tpu.matmul %0, %1, %cst {dimension_numbers = #tpu.dot_dimension_numbers<[1], [0], [0], [1], [0, 0, 1, 1], [], []>} : vector<8x128xf32>, vector<128x128xf32>, vector<8x128xf32> -> vector<8x128xf32>
    %4 = vector.broadcast %2 : vector<1x128xf32> to vector<8x128xf32>
    %5 = arith.addf %3, %4 : vector<8x128xf32>
    %cst_5 = arith.constant 0.000000e+00 : f32
    %6 = vector.broadcast %cst_5 : f32 to vector<8x128xf32>
    %7 = arith.cmpf ogt, %5, %6 : vector<8x128xf32>
    %8 = math.exp %5 : vector<8x128xf32>
    %cst_6 = arith.constant 1.000000e+00 : f32
    %9 = vector.broadcast %cst_6 : f32 to vector<8x128xf32>
    %10 = arith.subf %8, %9 : vector<8x128xf32>
    %cst_7 = arith.constant 1.67326319 : f32
    %11 = vector.broadcast %cst_7 : f32 to vector<8x128xf32>
    %12 = arith.mulf %11, %10 : vector<8x128xf32>
    %13 = arith.select %7, %5, %12 : vector<8x128xi1>, vector<8x128xf32>
    %cst_8 = arith.constant 1.05070102 : f32
    %14 = vector.broadcast %cst_8 : f32 to vector<8x128xf32>
    %15 = arith.mulf %14, %13 : vector<8x128xf32>
    %c0_9 = arith.constant 0 : index
    %c0_10 = arith.constant 0 : index
    %16 = vector.load %arg8[%c0_9, %c0_10] : memref<128x128xf32, #tpu.memory_space<vmem>>, vector<128x128xf32>
    %c0_11 = arith.constant 0 : index
    %c0_12 = arith.constant 0 : index
    %17 = vector.load %arg9[%c0_11, %c0_12] : memref<1x128xf32, #tpu.memory_space<vmem>>, vector<1x128xf32>
    %cst_13 = arith.constant dense<0.000000e+00> : vector<8x128xf32>
    %18 = tpu.matmul %15, %16, %cst_13 {dimension_numbers = #tpu.dot_dimension_numbers<[1], [0], [0], [1], [0, 0, 1, 1], [], []>} : vector<8x128xf32>, vector<128x128xf32>, vector<8x128xf32> -> vector<8x128xf32>
    %19 = vector.broadcast %17 : vector<1x128xf32> to vector<8x128xf32>
    %20 = arith.addf %18, %19 : vector<8x128xf32>
    %cst_14 = arith.constant 0.000000e+00 : f32
    %21 = vector.broadcast %cst_14 : f32 to vector<8x128xf32>
    %22 = arith.cmpf ogt, %20, %21 : vector<8x128xf32>
    %23 = math.exp %20 : vector<8x128xf32>
    %cst_15 = arith.constant 1.000000e+00 : f32
    %24 = vector.broadcast %cst_15 : f32 to vector<8x128xf32>
    %25 = arith.subf %23, %24 : vector<8x128xf32>
    %cst_16 = arith.constant 1.67326319 : f32
    %26 = vector.broadcast %cst_16 : f32 to vector<8x128xf32>
    %27 = arith.mulf %26, %25 : vector<8x128xf32>
    %28 = arith.select %22, %20, %27 : vector<8x128xi1>, vector<8x128xf32>
    %cst_17 = arith.constant 1.05070102 : f32
    %29 = vector.broadcast %cst_17 : f32 to vector<8x128xf32>
    %30 = arith.mulf %29, %28 : vector<8x128xf32>
    %c0_18 = arith.constant 0 : index
    %c0_19 = arith.constant 0 : index
    %31 = vector.load %arg10[%c0_18, %c0_19] : memref<128x128xf32, #tpu.memory_space<vmem>>, vector<128x128xf32>
    %c0_20 = arith.constant 0 : index
    %c0_21 = arith.constant 0 : index
    %32 = vector.load %arg11[%c0_20, %c0_21] : memref<1x128xf32, #tpu.memory_space<vmem>>, vector<1x128xf32>
    %cst_22 = arith.constant dense<0.000000e+00> : vector<8x128xf32>
    %33 = tpu.matmul %30, %31, %cst_22 {dimension_numbers = #tpu.dot_dimension_numbers<[1], [0], [0], [1], [0, 0, 1, 1], [], []>} : vector<8x128xf32>, vector<128x128xf32>, vector<8x128xf32> -> vector<8x128xf32>
    %34 = vector.broadcast %32 : vector<1x128xf32> to vector<8x128xf32>
    %35 = arith.addf %33, %34 : vector<8x128xf32>
    %cst_23 = arith.constant 0.000000e+00 : f32
    %36 = vector.broadcast %cst_23 : f32 to vector<8x128xf32>
    %37 = arith.cmpf ogt, %35, %36 : vector<8x128xf32>
    %38 = math.exp %35 : vector<8x128xf32>
    %cst_24 = arith.constant 1.000000e+00 : f32
    %39 = vector.broadcast %cst_24 : f32 to vector<8x128xf32>
    %40 = arith.subf %38, %39 : vector<8x128xf32>
    %cst_25 = arith.constant 1.67326319 : f32
    %41 = vector.broadcast %cst_25 : f32 to vector<8x128xf32>
    %42 = arith.mulf %41, %40 : vector<8x128xf32>
    %43 = arith.select %37, %35, %42 : vector<8x128xi1>, vector<8x128xf32>
    %cst_26 = arith.constant 1.05070102 : f32
    %44 = vector.broadcast %cst_26 : f32 to vector<8x128xf32>
    %45 = arith.mulf %44, %43 : vector<8x128xf32>
    %c0_27 = arith.constant 0 : index
    %c0_28 = arith.constant 0 : index
    %46 = vector.load %arg12[%c0_27, %c0_28] : memref<128x128xf32, #tpu.memory_space<vmem>>, vector<128x128xf32>
    %c0_29 = arith.constant 0 : index
    %c0_30 = arith.constant 0 : index
    %47 = vector.load %arg13[%c0_29, %c0_30] : memref<1x128xf32, #tpu.memory_space<vmem>>, vector<1x128xf32>
    %cst_31 = arith.constant dense<0.000000e+00> : vector<8x128xf32>
    %48 = tpu.matmul %45, %46, %cst_31 {dimension_numbers = #tpu.dot_dimension_numbers<[1], [0], [0], [1], [0, 0, 1, 1], [], []>} : vector<8x128xf32>, vector<128x128xf32>, vector<8x128xf32> -> vector<8x128xf32>
    %49 = vector.broadcast %47 : vector<1x128xf32> to vector<8x128xf32>
    %50 = arith.addf %48, %49 : vector<8x128xf32>
    %cst_32 = arith.constant 0.000000e+00 : f32
    %51 = vector.broadcast %cst_32 : f32 to vector<8x128xf32>
    %52 = arith.cmpf ogt, %50, %51 : vector<8x128xf32>
    %53 = math.exp %50 : vector<8x128xf32>
    %cst_33 = arith.constant 1.000000e+00 : f32
    %54 = vector.broadcast %cst_33 : f32 to vector<8x128xf32>
    %55 = arith.subf %53, %54 : vector<8x128xf32>
    %cst_34 = arith.constant 1.67326319 : f32
    %56 = vector.broadcast %cst_34 : f32 to vector<8x128xf32>
    %57 = arith.mulf %56, %55 : vector<8x128xf32>
    %58 = arith.select %52, %50, %57 : vector<8x128xi1>, vector<8x128xf32>
    %cst_35 = arith.constant 1.05070102 : f32
    %59 = vector.broadcast %cst_35 : f32 to vector<8x128xf32>
    %60 = arith.mulf %59, %58 : vector<8x128xf32>
    %c0_36 = arith.constant 0 : index
    %c0_37 = arith.constant 0 : index
    %61 = vector.load %arg14[%c0_36, %c0_37] : memref<128x128xf32, #tpu.memory_space<vmem>>, vector<128x128xf32>
    %c0_38 = arith.constant 0 : index
    %c0_39 = arith.constant 0 : index
    %62 = vector.load %arg15[%c0_38, %c0_39] : memref<1x128xf32, #tpu.memory_space<vmem>>, vector<1x128xf32>
    %cst_40 = arith.constant dense<0.000000e+00> : vector<8x128xf32>
    %63 = tpu.matmul %60, %61, %cst_40 {dimension_numbers = #tpu.dot_dimension_numbers<[1], [0], [0], [1], [0, 0, 1, 1], [], []>} : vector<8x128xf32>, vector<128x128xf32>, vector<8x128xf32> -> vector<8x128xf32>
    %64 = vector.broadcast %62 : vector<1x128xf32> to vector<8x128xf32>
    %65 = arith.addf %63, %64 : vector<8x128xf32>
    %cst_41 = arith.constant 0.000000e+00 : f32
    %66 = vector.broadcast %cst_41 : f32 to vector<8x128xf32>
    %67 = arith.cmpf ogt, %65, %66 : vector<8x128xf32>
    %68 = math.exp %65 : vector<8x128xf32>
    %cst_42 = arith.constant 1.000000e+00 : f32
    %69 = vector.broadcast %cst_42 : f32 to vector<8x128xf32>
    %70 = arith.subf %68, %69 : vector<8x128xf32>
    %cst_43 = arith.constant 1.67326319 : f32
    %71 = vector.broadcast %cst_43 : f32 to vector<8x128xf32>
    %72 = arith.mulf %71, %70 : vector<8x128xf32>
    %73 = arith.select %67, %65, %72 : vector<8x128xi1>, vector<8x128xf32>
    %cst_44 = arith.constant 1.05070102 : f32
    %74 = vector.broadcast %cst_44 : f32 to vector<8x128xf32>
    %75 = arith.mulf %74, %73 : vector<8x128xf32>
    %c0_45 = arith.constant 0 : index
    %c0_46 = arith.constant 0 : index
    %76 = vector.load %arg16[%c0_45, %c0_46] : memref<128x128xf32, #tpu.memory_space<vmem>>, vector<128x128xf32>
    %c0_47 = arith.constant 0 : index
    %c0_48 = arith.constant 0 : index
    %77 = vector.load %arg17[%c0_47, %c0_48] : memref<1x128xf32, #tpu.memory_space<vmem>>, vector<1x128xf32>
    %cst_49 = arith.constant dense<0.000000e+00> : vector<8x128xf32>
    %78 = tpu.matmul %75, %76, %cst_49 {dimension_numbers = #tpu.dot_dimension_numbers<[1], [0], [0], [1], [0, 0, 1, 1], [], []>} : vector<8x128xf32>, vector<128x128xf32>, vector<8x128xf32> -> vector<8x128xf32>
    %79 = vector.broadcast %77 : vector<1x128xf32> to vector<8x128xf32>
    %80 = arith.addf %78, %79 : vector<8x128xf32>
    %c0_50 = arith.constant 0 : index
    %c0_51 = arith.constant 0 : index
    %81 = vector.load %arg2[%c0_50, %c0_51] : memref<8x128xf32, #tpu.memory_space<vmem>>, vector<8x128xf32>
    %c0_52 = arith.constant 0 : index
    %c0_53 = arith.constant 0 : index
    %82 = vector.load %arg18[%c0_52, %c0_53] : memref<128x128xf32, #tpu.memory_space<vmem>>, vector<128x128xf32>
    %c0_54 = arith.constant 0 : index
    %c0_55 = arith.constant 0 : index
    %83 = vector.load %arg19[%c0_54, %c0_55] : memref<1x128xf32, #tpu.memory_space<vmem>>, vector<1x128xf32>
    %cst_56 = arith.constant dense<0.000000e+00> : vector<8x128xf32>
    %84 = tpu.matmul %81, %82, %cst_56 {dimension_numbers = #tpu.dot_dimension_numbers<[1], [0], [0], [1], [0, 0, 1, 1], [], []>} : vector<8x128xf32>, vector<128x128xf32>, vector<8x128xf32> -> vector<8x128xf32>
    %85 = vector.broadcast %83 : vector<1x128xf32> to vector<8x128xf32>
    %86 = arith.addf %84, %85 : vector<8x128xf32>
    %cst_57 = arith.constant 0.000000e+00 : f32
    %87 = vector.broadcast %cst_57 : f32 to vector<8x128xf32>
    %88 = arith.cmpf ogt, %86, %87 : vector<8x128xf32>
    %89 = math.exp %86 : vector<8x128xf32>
    %cst_58 = arith.constant 1.000000e+00 : f32
    %90 = vector.broadcast %cst_58 : f32 to vector<8x128xf32>
    %91 = arith.subf %89, %90 : vector<8x128xf32>
    %cst_59 = arith.constant 1.67326319 : f32
    %92 = vector.broadcast %cst_59 : f32 to vector<8x128xf32>
    %93 = arith.mulf %92, %91 : vector<8x128xf32>
    %94 = arith.select %88, %86, %93 : vector<8x128xi1>, vector<8x128xf32>
    %cst_60 = arith.constant 1.05070102 : f32
    %95 = vector.broadcast %cst_60 : f32 to vector<8x128xf32>
    %96 = arith.mulf %95, %94 : vector<8x128xf32>
    %c0_61 = arith.constant 0 : index
    %c0_62 = arith.constant 0 : index
    %97 = vector.load %arg20[%c0_61, %c0_62] : memref<128x128xf32, #tpu.memory_space<vmem>>, vector<128x128xf32>
    %c0_63 = arith.constant 0 : index
    %c0_64 = arith.constant 0 : index
    %98 = vector.load %arg21[%c0_63, %c0_64] : memref<1x128xf32, #tpu.memory_space<vmem>>, vector<1x128xf32>
    %cst_65 = arith.constant dense<0.000000e+00> : vector<8x128xf32>
    %99 = tpu.matmul %96, %97, %cst_65 {dimension_numbers = #tpu.dot_dimension_numbers<[1], [0], [0], [1], [0, 0, 1, 1], [], []>} : vector<8x128xf32>, vector<128x128xf32>, vector<8x128xf32> -> vector<8x128xf32>
    %100 = vector.broadcast %98 : vector<1x128xf32> to vector<8x128xf32>
    %101 = arith.addf %99, %100 : vector<8x128xf32>
    %cst_66 = arith.constant 0.000000e+00 : f32
    %102 = vector.broadcast %cst_66 : f32 to vector<8x128xf32>
    %103 = arith.cmpf ogt, %101, %102 : vector<8x128xf32>
    %104 = math.exp %101 : vector<8x128xf32>
    %cst_67 = arith.constant 1.000000e+00 : f32
    %105 = vector.broadcast %cst_67 : f32 to vector<8x128xf32>
    %106 = arith.subf %104, %105 : vector<8x128xf32>
    %cst_68 = arith.constant 1.67326319 : f32
    %107 = vector.broadcast %cst_68 : f32 to vector<8x128xf32>
    %108 = arith.mulf %107, %106 : vector<8x128xf32>
    %109 = arith.select %103, %101, %108 : vector<8x128xi1>, vector<8x128xf32>
    %cst_69 = arith.constant 1.05070102 : f32
    %110 = vector.broadcast %cst_69 : f32 to vector<8x128xf32>
    %111 = arith.mulf %110, %109 : vector<8x128xf32>
    %c0_70 = arith.constant 0 : index
    %c0_71 = arith.constant 0 : index
    %112 = vector.load %arg22[%c0_70, %c0_71] : memref<128x128xf32, #tpu.memory_space<vmem>>, vector<128x128xf32>
    %c0_72 = arith.constant 0 : index
    %c0_73 = arith.constant 0 : index
    %113 = vector.load %arg23[%c0_72, %c0_73] : memref<1x128xf32, #tpu.memory_space<vmem>>, vector<1x128xf32>
    %cst_74 = arith.constant dense<0.000000e+00> : vector<8x128xf32>
    %114 = tpu.matmul %111, %112, %cst_74 {dimension_numbers = #tpu.dot_dimension_numbers<[1], [0], [0], [1], [0, 0, 1, 1], [], []>} : vector<8x128xf32>, vector<128x128xf32>, vector<8x128xf32> -> vector<8x128xf32>
    %115 = vector.broadcast %113 : vector<1x128xf32> to vector<8x128xf32>
    %116 = arith.addf %114, %115 : vector<8x128xf32>
    %c0_75 = arith.constant 0 : index
    %c0_76 = arith.constant 0 : index
    %117 = vector.load %arg3[%c0_75, %c0_76] : memref<8x128xf32, #tpu.memory_space<vmem>>, vector<8x128xf32>
    %118 = arith.subf %117, %80 : vector<8x128xf32>
    %c0_77 = arith.constant 0 : index
    %c0_78 = arith.constant 0 : index
    %119 = vector.load %arg4[%c0_77, %c0_78] : memref<1x128xf32, #tpu.memory_space<vmem>>, vector<1x128xf32>
    %120 = vector.broadcast %119 : vector<1x128xf32> to vector<8x128xf32>
    %121 = arith.mulf %118, %120 : vector<8x128xf32>
    %122 = arith.mulf %121, %121 : vector<8x128xf32>
    %cst_79 = arith.constant dense<0.000000e+00> : vector<8xf32>
    %123 = vector.multi_reduction <add>, %122, %cst_79 [1] : vector<8x128xf32> to vector<8xf32>
    %124 = vector.shape_cast %123 : vector<8xf32> to vector<8x1xf32>
    %125 = arith.addf %80, %116 : vector<8x128xf32>
    %c0_80 = arith.constant 0 : index
    %c0_81 = arith.constant 0 : index
    %126 = vector.load %arg5[%c0_80, %c0_81] : memref<1x128xf32, #tpu.memory_space<vmem>>, vector<1x128xf32>
    %127 = vector.broadcast %124 : vector<8x1xf32> to vector<8x128xf32>
    %128 = vector.broadcast %126 : vector<1x128xf32> to vector<8x128xf32>
    %129 = arith.mulf %127, %128 : vector<8x128xf32>
    %130 = arith.addf %125, %129 : vector<8x128xf32>
    %c0_82 = arith.constant 0 : index
    %c0_83 = arith.constant 0 : index
    %131 = vector.load %arg24[%c0_82, %c0_83] : memref<8x128xf32, #tpu.memory_space<vmem>>, vector<8x128xf32>
    tpu.vector_store %arg24[%c0_82, %c0_83], %130 {strides = array<i32>} : memref<8x128xf32, #tpu.memory_space<vmem>>, vector<8x128xf32>,
    return
  }
  func.func @transform_0(%arg0: i32) -> (i32, i32) {
    %c0_i32 = arith.constant 0 : i32
    %c0_i32_0 = arith.constant 0 : i32
    return %arg0, %c0_i32 : i32, i32
  }
  func.func @transform_1(%arg0: i32) -> (i32, i32) {
    %c0_i32 = arith.constant 0 : i32
    %c0_i32_0 = arith.constant 0 : i32
    return %arg0, %c0_i32 : i32, i32
  }
  func.func @transform_2(%arg0: i32) -> (i32, i32) {
    %c0_i32 = arith.constant 0 : i32
    %c0_i32_0 = arith.constant 0 : i32
    return %arg0, %c0_i32 : i32, i32
  }
  func.func @transform_3(%arg0: i32) -> (i32, i32) {
    %c0_i32 = arith.constant 0 : i32
    %c0_i32_0 = arith.constant 0 : i32
    %c0_i32_1 = arith.constant 0 : i32
    return %c0_i32, %c0_i32_0 : i32, i32
  }
  func.func @transform_4(%arg0: i32) -> (i32, i32) {
    %c0_i32 = arith.constant 0 : i32
    %c0_i32_0 = arith.constant 0 : i32
    %c0_i32_1 = arith.constant 0 : i32
    return %c0_i32, %c0_i32_0 : i32, i32
  }
  func.func @transform_5(%arg0: i32) -> (i32, i32) {
    %c0_i32 = arith.constant 0 : i32
    %c0_i32_0 = arith.constant 0 : i32
    %c0_i32_1 = arith.constant 0 : i32
    return %c0_i32, %c0_i32_0 : i32, i32
  }
  func.func @transform_6(%arg0: i32) -> (i32, i32) {
    %c0_i32 = arith.constant 0 : i32
    %c0_i32_0 = arith.constant 0 : i32
    %c0_i32_1 = arith.constant 0 : i32
    return %c0_i32, %c0_i32_0 : i32, i32
  }
  func.func @transform_7(%arg0: i32) -> (i32, i32) {
    %c0_i32 = arith.constant 0 : i32
    %c0_i32_0 = arith.constant 0 : i32
    %c0_i32_1 = arith.constant 0 : i32
    return %c0_i32, %c0_i32_0 : i32, i32
  }
  func.func @transform_8(%arg0: i32) -> (i32, i32) {
    %c0_i32 = arith.constant 0 : i32
    %c0_i32_0 = arith.constant 0 : i32
    %c0_i32_1 = arith.constant 0 : i32
    return %c0_i32, %c0_i32_0 : i32, i32
  }
  func.func @transform_9(%arg0: i32) -> (i32, i32) {
    %c0_i32 = arith.constant 0 : i32
    %c0_i32_0 = arith.constant 0 : i32
    %c0_i32_1 = arith.constant 0 : i32
    return %c0_i32, %c0_i32_0 : i32, i32
  }
  func.func @transform_10(%arg0: i32) -> (i32, i32) {
    %c0_i32 = arith.constant 0 : i32
    %c0_i32_0 = arith.constant 0 : i32
    %c0_i32_1 = arith.constant 0 : i32
    return %c0_i32, %c0_i32_0 : i32, i32
  }
  func.func @transform_11(%arg0: i32) -> (i32, i32) {
    %c0_i32 = arith.constant 0 : i32
    %c0_i32_0 = arith.constant 0 : i32
    %c0_i32_1 = arith.constant 0 : i32
    return %c0_i32, %c0_i32_0 : i32, i32
  }
  func.func @transform_12(%arg0: i32) -> (i32, i32) {
    %c0_i32 = arith.constant 0 : i32
    %c0_i32_0 = arith.constant 0 : i32
    %c0_i32_1 = arith.constant 0 : i32
    return %c0_i32, %c0_i32_0 : i32, i32
  }
  func.func @transform_13(%arg0: i32) -> (i32, i32) {
    %c0_i32 = arith.constant 0 : i32
    %c0_i32_0 = arith.constant 0 : i32
    %c0_i32_1 = arith.constant 0 : i32
    return %c0_i32, %c0_i32_0 : i32, i32
  }
  func.func @transform_14(%arg0: i32) -> (i32, i32) {
    %c0_i32 = arith.constant 0 : i32
    %c0_i32_0 = arith.constant 0 : i32
    %c0_i32_1 = arith.constant 0 : i32
    return %c0_i32, %c0_i32_0 : i32, i32
  }
  func.func @transform_15(%arg0: i32) -> (i32, i32) {
    %c0_i32 = arith.constant 0 : i32
    %c0_i32_0 = arith.constant 0 : i32
    %c0_i32_1 = arith.constant 0 : i32
    return %c0_i32, %c0_i32_0 : i32, i32
  }
  func.func @transform_16(%arg0: i32) -> (i32, i32) {
    %c0_i32 = arith.constant 0 : i32
    %c0_i32_0 = arith.constant 0 : i32
    %c0_i32_1 = arith.constant 0 : i32
    return %c0_i32, %c0_i32_0 : i32, i32
  }
  func.func @transform_17(%arg0: i32) -> (i32, i32) {
    %c0_i32 = arith.constant 0 : i32
    %c0_i32_0 = arith.constant 0 : i32
    %c0_i32_1 = arith.constant 0 : i32
    return %c0_i32, %c0_i32_0 : i32, i32
  }
  func.func @transform_18(%arg0: i32) -> (i32, i32) {
    %c0_i32 = arith.constant 0 : i32
    %c0_i32_0 = arith.constant 0 : i32
    %c0_i32_1 = arith.constant 0 : i32
    return %c0_i32, %c0_i32_0 : i32, i32
  }
  func.func @transform_19(%arg0: i32) -> (i32, i32) {
    %c0_i32 = arith.constant 0 : i32
    %c0_i32_0 = arith.constant 0 : i32
    %c0_i32_1 = arith.constant 0 : i32
    return %c0_i32, %c0_i32_0 : i32, i32
  }
  func.func @transform_20(%arg0: i32) -> (i32, i32) {
    %c0_i32 = arith.constant 0 : i32
    %c0_i32_0 = arith.constant 0 : i32
    %c0_i32_1 = arith.constant 0 : i32
    return %c0_i32, %c0_i32_0 : i32, i32
  }
  func.func @transform_21(%arg0: i32) -> (i32, i32) {
    %c0_i32 = arith.constant 0 : i32
    %c0_i32_0 = arith.constant 0 : i32
    %c0_i32_1 = arith.constant 0 : i32
    return %c0_i32, %c0_i32_0 : i32, i32
  }
  func.func @transform_22(%arg0: i32) -> (i32, i32) {
    %c0_i32 = arith.constant 0 : i32
    %c0_i32_0 = arith.constant 0 : i32
    %c0_i32_1 = arith.constant 0 : i32
    return %c0_i32, %c0_i32_0 : i32, i32
  }
  func.func @transform_23(%arg0: i32) -> (i32, i32) {
    %c0_i32 = arith.constant 0 : i32
    %c0_i32_0 = arith.constant 0 : i32
    return %arg0, %c0_i32 : i32, i32
  }
}

</mosaic_0001>

<llo_original>
// kernel: _lambda_.1
$region0: #{_lambda_.1}
  #allocation0 [shape = 'u32[]', space=smem, size = 0x4, offset = 0x4, fixed_abs, tag = 'smem constant byte address 0x4 - core index']
  #allocation1 [shape = 'u32[144,128]{1,0:T(1,128)}', space=vmem, size = 0x12000, scoped, tag = 'internal scratch']
  %s0 = inlined_call_operand.vmem [shape: f32[16,128], index: 0, kind: input, shape index: {}]
  %s1 = inlined_call_operand.vmem [shape: f32[16,128], index: 1, kind: input, shape index: {}]
  %s2 = inlined_call_operand.vmem [shape: f32[16,128], index: 2, kind: input, shape index: {}]
  %s3 = inlined_call_operand.vmem [shape: f32[1,128], index: 3, kind: input, shape index: {}]
  %s4 = inlined_call_operand.vmem [shape: f32[1,128], index: 4, kind: input, shape index: {}]
  %s5 = inlined_call_operand.vmem [shape: f32[128,128], index: 5, kind: input, shape index: {}]
  %s6 = inlined_call_operand.vmem [shape: f32[1,128], index: 6, kind: input, shape index: {}, may-alias: {6,8,10,12,14,16,18,20,22}]
  %s7 = inlined_call_operand.hbm [shape: f32[128,128], index: 7, kind: input, shape index: {}]
  %s8 = inlined_call_operand.vmem [shape: f32[1,128], index: 8, kind: input, shape index: {}, may-alias: {6,8,10,12,14,16,18,20,22}]
  %s9 = inlined_call_operand.hbm [shape: f32[128,128], index: 9, kind: input, shape index: {}]
  %s10 = inlined_call_operand.vmem [shape: f32[1,128], index: 10, kind: input, shape index: {}, may-alias: {6,8,10,12,14,16,18,20,22}]
  %s11 = inlined_call_operand.hbm [shape: f32[128,128], index: 11, kind: input, shape index: {}]
  %s12 = inlined_call_operand.vmem [shape: f32[1,128], index: 12, kind: input, shape index: {}, may-alias: {6,8,10,12,14,16,18,20,22}]
  %s13 = inlined_call_operand.hbm [shape: f32[128,128], index: 13, kind: input, shape index: {}]
  %s14 = inlined_call_operand.vmem [shape: f32[1,128], index: 14, kind: input, shape index: {}, may-alias: {6,8,10,12,14,16,18,20,22}]
  %s15 = inlined_call_operand.hbm [shape: f32[128,128], index: 15, kind: input, shape index: {}]
  %s16 = inlined_call_operand.vmem [shape: f32[1,128], index: 16, kind: input, shape index: {}, may-alias: {6,8,10,12,14,16,18,20,22}]
  %s17 = inlined_call_operand.hbm [shape: f32[128,128], index: 17, kind: input, shape index: {}]
  %s18 = inlined_call_operand.vmem [shape: f32[1,128], index: 18, kind: input, shape index: {}, may-alias: {6,8,10,12,14,16,18,20,22}]
  %s19 = inlined_call_operand.hbm [shape: f32[128,128], index: 19, kind: input, shape index: {}]
  %s20 = inlined_call_operand.vmem [shape: f32[1,128], index: 20, kind: input, shape index: {}, may-alias: {6,8,10,12,14,16,18,20,22}]
  %s21 = inlined_call_operand.hbm [shape: f32[128,128], index: 21, kind: input, shape index: {}]
  %s22 = inlined_call_operand.vmem [shape: f32[1,128], index: 22, kind: input, shape index: {}, may-alias: {6,8,10,12,14,16,18,20,22}]
  %s23 = inlined_call_operand.vmem [shape: f32[16,128], index: 23, kind: output, shape index: {}]
  %s24 = sld [smem:[#allocation0]]
  $region157: #{_lambda_.1} parent=0
    _
  %s26 = ssub.s32 1, %s24
  %s27 = scalar_select 0, %s26, %s24
  $region1: #{_lambda_.1} parent=0
    #allocation2 [shape = 'u8[65536]{0}', space=vmem, size = 0x10000, scoped, tag = 'input window, operand 7, single buffered']
    #allocation3 [shape = 's32[2]{0}', space=sflag, size = 0x8, scoped, tag = 'scoped memory for _lambda_.1']
    #allocation4 [shape = 'u8[65536]{0}', space=vmem, size = 0x10000, scoped, tag = 'input window, operand 9, single buffered']
    #allocation5 [shape = 's32[1]{0}', space=sflag, size = 0x4, scoped, tag = 'scoped memory for _lambda_.1']
    #allocation6 [shape = 'u8[65536]{0}', space=vmem, size = 0x10000, scoped, tag = 'input window, operand 11, single buffered']
    #allocation7 [shape = 'u8[65536]{0}', space=vmem, size = 0x10000, scoped, tag = 'input window, operand 13, single buffered']
    #allocation8 [shape = 's32[1]{0}', space=sflag, size = 0x4, scoped, tag = 'scoped memory for _lambda_.1']
    #allocation9 [shape = 'u8[65536]{0}', space=vmem, size = 0x10000, scoped, tag = 'input window, operand 15, single buffered']
    #allocation10 [shape = 'u8[65536]{0}', space=vmem, size = 0x10000, scoped, tag = 'input window, operand 17, single buffered']
    #allocation11 [shape = 's32[1]{0}', space=sflag, size = 0x4, scoped, tag = 'scoped memory for _lambda_.1']
    #allocation12 [shape = 'u8[65536]{0}', space=vmem, size = 0x10000, scoped, tag = 'input window, operand 19, single buffered']
    #allocation13 [shape = 'u8[65536]{0}', space=vmem, size = 0x10000, scoped, tag = 'input window, operand 21, single buffered']
    #allocation14 [shape = 's32[1]{0}', space=sflag, size = 0x4, scoped, tag = 'scoped memory for _lambda_.1']
    %28 = vsyncpa [#allocation3], 0
    %29 = vsyncpa [#allocation5], 0
    %30 = vsyncpa [#allocation8], 0
    %31 = vsyncpa [#allocation11], 0
    %32 = vsyncpa [#allocation14], 0
    loop: start=0, step=1, limit=4
    $region2: #{_lambda_.1} parent=1 // loop_pre_header
      _
    $region3: #{_lambda_.1} parent=1 // loop_header
      %s34 = sphi 0, %s38
      %p35 = scmp.ge.s32.totalorder %s34, 4
      %s44 = sphi 0, %s46
      %s47 = sphi 0, %s44
      %s48 = sphi 0, %s47
      %s64 = sphi 0, %s48
      %s70 = sphi 0, %s72
      %s73 = sphi 0, %s70
      %s74 = sphi 0, %s73
      %s90 = sphi 0, %s74
      %s96 = sphi 0, %s98
      %s99 = sphi 0, %s96
      %s100 = sphi 0, %s99
      %s116 = sphi 0, %s100
      %s120 = sphi 0, %s120
      %s122 = sphi 0, %s120
      %s123 = sphi 0, %s122
      %s137 = sphi 0, %s123
      %s141 = sphi 0, %s141
      %s143 = sphi 0, %s141
      %s144 = sphi 0, %s143
      %s158 = sphi 0, %s144
      %s162 = sphi 0, %s162
      %s164 = sphi 0, %s162
      %s165 = sphi 0, %s164
      %s179 = sphi 0, %s165
      %s183 = sphi 0, %s183
      %s185 = sphi 0, %s183
      %s186 = sphi 0, %s185
      %s200 = sphi 0, %s186
      %s204 = sphi 0, %s204
      %s206 = sphi 0, %s204
      %s207 = sphi 0, %s206
      %s221 = sphi 0, %s207
      %s225 = sphi 0, %s225
      %s227 = sphi 0, %s225
      %s228 = sphi 0, %s227
      %s242 = sphi 0, %s228
      %s246 = sphi 0, %s246
      %s248 = sphi 0, %s246
      %s249 = sphi 0, %s248
      %s263 = sphi 0, %s249
      %s267 = sphi 0, %s267
      %s269 = sphi 0, %s267
      %s270 = sphi 0, %s269
      %s284 = sphi 0, %s270
      %s288 = sphi 0, %s288
      %s290 = sphi 0, %s288
      %s291 = sphi 0, %s290
      %s305 = sphi 0, %s291
      %s309 = sphi 0, %s309
      %s311 = sphi 0, %s309
      %s312 = sphi 0, %s311
      %s326 = sphi 0, %s312
      %s330 = sphi 0, %s330
      %s332 = sphi 0, %s330
      %s333 = sphi 0, %s332
      %s347 = sphi 0, %s333
      %s351 = sphi 0, %s351
      %s353 = sphi 0, %s351
      %s354 = sphi 0, %s353
      %s368 = sphi 0, %s354
      %s372 = sphi 0, %s372
      %s374 = sphi 0, %s372
      %s375 = sphi 0, %s374
      %s389 = sphi 0, %s375
      %s393 = sphi 0, %s393
      %s395 = sphi 0, %s393
      %s396 = sphi 0, %s395
      %s410 = sphi 0, %s396
      %s414 = sphi 0, %s414
      %s416 = sphi 0, %s414
      %s417 = sphi 0, %s416
      %s431 = sphi 0, %s417
      %s435 = sphi 0, %s435
      %s437 = sphi 0, %s435
      %s438 = sphi 0, %s437
      %s452 = sphi 0, %s438
      %s456 = sphi 0, %s456
      %s458 = sphi 0, %s456
      %s459 = sphi 0, %s458
      %s473 = sphi 0, %s459
      %s477 = sphi 0, %s477
      %s479 = sphi 0, %s477
      %s480 = sphi 0, %s479
      %s494 = sphi 0, %s480
      %s498 = sphi 0, %s498
      %s500 = sphi 0, %s498
      %s501 = sphi 0, %s500
      %s515 = sphi 0, %s501
      %s519 = sphi 0, %s519
      %s521 = sphi 0, %s519
      %s522 = sphi 0, %s521
      %s536 = sphi 0, %s522
      %s542 = sphi 0, %s544
      %s545 = sphi 0, %s542
      %s546 = sphi 0, %s545
      %s562 = sphi 0, %s546
    $region4: #{_lambda_.1} parent=1 // loop_header_branch
      %37 = sbr.rel (%p35) target = $region8
    $region5: #{_lambda_.1} parent=1 // loop_body
      %s39 = ssub.s32 %s34, 1
      %s40 = ssub.s32 %s34, 2
      %s41 = sadd.s32 %s34, 1
      %s42 = ssub.s32 %s34, %s41
      %p43 = scmp.eq.s32.totalorder %s42, 0
      %s45 = sadd.s32 %s44, 1
      %s46 = scalar_select %p43, %s44, %s45
      %p49 = pneg %p43
      %p50 = scmp.eq.s32.totalorder %s34, 1
      %p51 = por %p49, %p50
      %p52 = scmp.ne.s32.totalorder %s44, %s47
      %p53 = scmp.eq.s32.totalorder %s34, 0
      %p54 = por %p52, %p53
      %p55 = scmp.ne.s32.totalorder %s44, %s47
      %p56 = scmp.eq.s32.totalorder %s39, 1
      %p57 = por %p55, %p56
      %p58 = scmp.ne.s32.totalorder %s47, %s48
      %p59 = scmp.eq.s32.totalorder %s39, 0
      %p60 = por %p58, %p59
      %p61 = scmp.ne.s32.totalorder %s47, %s48
      %p62 = scmp.eq.s32.totalorder %s40, 1
      %p63 = por %p61, %p62
      %p65 = scmp.ne.s32.totalorder %s48, %s64
      %p66 = scmp.eq.s32.totalorder %s40, 0
      %p67 = por %p65, %p66
      %s68 = ssub.s32 %s34, %s41
      %p69 = scmp.eq.s32.totalorder %s68, 0
      %s71 = sadd.s32 %s70, 1
      %s72 = scalar_select %p69, %s70, %s71
      %p75 = pneg %p69
      %p76 = scmp.eq.s32.totalorder %s34, 1
      %p77 = por %p75, %p76
      %p78 = scmp.ne.s32.totalorder %s70, %s73
      %p79 = scmp.eq.s32.totalorder %s34, 0
      %p80 = por %p78, %p79
      %p81 = scmp.ne.s32.totalorder %s70, %s73
      %p82 = scmp.eq.s32.totalorder %s39, 1
      %p83 = por %p81, %p82
      %p84 = scmp.ne.s32.totalorder %s73, %s74
      %p85 = scmp.eq.s32.totalorder %s39, 0
      %p86 = por %p84, %p85
      %p87 = scmp.ne.s32.totalorder %s73, %s74
      %p88 = scmp.eq.s32.totalorder %s40, 1
      %p89 = por %p87, %p88
      %p91 = scmp.ne.s32.totalorder %s74, %s90
      %p92 = scmp.eq.s32.totalorder %s40, 0
      %p93 = por %p91, %p92
      %s94 = ssub.s32 %s34, %s41
      %p95 = scmp.eq.s32.totalorder %s94, 0
      %s97 = sadd.s32 %s96, 1
      %s98 = scalar_select %p95, %s96, %s97
      %p101 = pneg %p95
      %p102 = scmp.eq.s32.totalorder %s34, 1
      %p103 = por %p101, %p102
      %p104 = scmp.ne.s32.totalorder %s96, %s99
      %p105 = scmp.eq.s32.totalorder %s34, 0
      %p106 = por %p104, %p105
      %p107 = scmp.ne.s32.totalorder %s96, %s99
      %p108 = scmp.eq.s32.totalorder %s39, 1
      %p109 = por %p107, %p108
      %p110 = scmp.ne.s32.totalorder %s99, %s100
      %p111 = scmp.eq.s32.totalorder %s39, 0
      %p112 = por %p110, %p111
      %p113 = scmp.ne.s32.totalorder %s99, %s100
      %p114 = scmp.eq.s32.totalorder %s40, 1
      %p115 = por %p113, %p114
      %p117 = scmp.ne.s32.totalorder %s100, %s116
      %p118 = scmp.eq.s32.totalorder %s40, 0
      %p119 = por %p117, %p118
      %s121 = sadd.s32 %s120, 1
      %p124 = scmp.eq.s32.totalorder %s34, 1
      %p125 = scmp.ne.s32.totalorder %s120, %s122
      %p126 = scmp.eq.s32.totalorder %s34, 0
      %p127 = por %p125, %p126
      %p128 = scmp.ne.s32.totalorder %s120, %s122
      %p129 = scmp.eq.s32.totalorder %s39, 1
      %p130 = por %p128, %p129
      %p131 = scmp.ne.s32.totalorder %s122, %s123
      %p132 = scmp.eq.s32.totalorder %s39, 0
      %p133 = por %p131, %p132
      %p134 = scmp.ne.s32.totalorder %s122, %s123
      %p135 = scmp.eq.s32.totalorder %s40, 1
      %p136 = por %p134, %p135
      %p138 = scmp.ne.s32.totalorder %s123, %s137
      %p139 = scmp.eq.s32.totalorder %s40, 0
      %p140 = por %p138, %p139
      %s142 = sadd.s32 %s141, 1
      %p145 = scmp.eq.s32.totalorder %s34, 1
      %p146 = scmp.ne.s32.totalorder %s141, %s143
      %p147 = scmp.eq.s32.totalorder %s34, 0
      %p148 = por %p146, %p147
      %p149 = scmp.ne.s32.totalorder %s141, %s143
      %p150 = scmp.eq.s32.totalorder %s39, 1
      %p151 = por %p149, %p150
      %p152 = scmp.ne.s32.totalorder %s143, %s144
      %p153 = scmp.eq.s32.totalorder %s39, 0
      %p154 = por %p152, %p153
      %p155 = scmp.ne.s32.totalorder %s143, %s144
      %p156 = scmp.eq.s32.totalorder %s40, 1
      %p157 = por %p155, %p156
      %p159 = scmp.ne.s32.totalorder %s144, %s158
      %p160 = scmp.eq.s32.totalorder %s40, 0
      %p161 = por %p159, %p160
      %s163 = sadd.s32 %s162, 1
      %p166 = scmp.eq.s32.totalorder %s34, 1
      %p167 = scmp.ne.s32.totalorder %s162, %s164
      %p168 = scmp.eq.s32.totalorder %s34, 0
      %p169 = por %p167, %p168
      %p170 = scmp.ne.s32.totalorder %s162, %s164
      %p171 = scmp.eq.s32.totalorder %s39, 1
      %p172 = por %p170, %p171
      %p173 = scmp.ne.s32.totalorder %s164, %s165
      %p174 = scmp.eq.s32.totalorder %s39, 0
      %p175 = por %p173, %p174
      %p176 = scmp.ne.s32.totalorder %s164, %s165
      %p177 = scmp.eq.s32.totalorder %s40, 1
      %p178 = por %p176, %p177
      %p180 = scmp.ne.s32.totalorder %s165, %s179
      %p181 = scmp.eq.s32.totalorder %s40, 0
      %p182 = por %p180, %p181
      %s184 = sadd.s32 %s183, 1
      %p187 = scmp.eq.s32.totalorder %s34, 1
      %p188 = scmp.ne.s32.totalorder %s183, %s185
      %p189 = scmp.eq.s32.totalorder %s34, 0
      %p190 = por %p188, %p189
      %p191 = scmp.ne.s32.totalorder %s183, %s185
      %p192 = scmp.eq.s32.totalorder %s39, 1
      %p193 = por %p191, %p192
      %p194 = scmp.ne.s32.totalorder %s185, %s186
      %p195 = scmp.eq.s32.totalorder %s39, 0
      %p196 = por %p194, %p195
      %p197 = scmp.ne.s32.totalorder %s185, %s186
      %p198 = scmp.eq.s32.totalorder %s40, 1
      %p199 = por %p197, %p198
      %p201 = scmp.ne.s32.totalorder %s186, %s200
      %p202 = scmp.eq.s32.totalorder %s40, 0
      %p203 = por %p201, %p202
      %s205 = sadd.s32 %s204, 1
      %p208 = scmp.eq.s32.totalorder %s34, 1
      %p209 = scmp.ne.s32.totalorder %s204, %s206
      %p210 = scmp.eq.s32.totalorder %s34, 0
      %p211 = por %p209, %p210
      %p212 = scmp.ne.s32.totalorder %s204, %s206
      %p213 = scmp.eq.s32.totalorder %s39, 1
      %p214 = por %p212, %p213
      %p215 = scmp.ne.s32.totalorder %s206, %s207
      %p216 = scmp.eq.s32.totalorder %s39, 0
      %p217 = por %p215, %p216
      %p218 = scmp.ne.s32.totalorder %s206, %s207
      %p219 = scmp.eq.s32.totalorder %s40, 1
      %p220 = por %p218, %p219
      %p222 = scmp.ne.s32.totalorder %s207, %s221
      %p223 = scmp.eq.s32.totalorder %s40, 0
      %p224 = por %p222, %p223
      %s226 = sadd.s32 %s225, 1
      %p229 = scmp.eq.s32.totalorder %s34, 1
      %p230 = scmp.ne.s32.totalorder %s225, %s227
      %p231 = scmp.eq.s32.totalorder %s34, 0
      %p232 = por %p230, %p231
      %p233 = scmp.ne.s32.totalorder %s225, %s227
      %p234 = scmp.eq.s32.totalorder %s39, 1
      %p235 = por %p233, %p234
      %p236 = scmp.ne.s32.totalorder %s227, %s228
      %p237 = scmp.eq.s32.totalorder %s39, 0
      %p238 = por %p236, %p237
      %p239 = scmp.ne.s32.totalorder %s227, %s228
      %p240 = scmp.eq.s32.totalorder %s40, 1
      %p241 = por %p239, %p240
      %p243 = scmp.ne.s32.totalorder %s228, %s242
      %p244 = scmp.eq.s32.totalorder %s40, 0
      %p245 = por %p243, %p244
      %s247 = sadd.s32 %s246, 1
      %p250 = scmp.eq.s32.totalorder %s34, 1
      %p251 = scmp.ne.s32.totalorder %s246, %s248
      %p252 = scmp.eq.s32.totalorder %s34, 0
      %p253 = por %p251, %p252
      %p254 = scmp.ne.s32.totalorder %s246, %s248
      %p255 = scmp.eq.s32.totalorder %s39, 1
      %p256 = por %p254, %p255
      %p257 = scmp.ne.s32.totalorder %s248, %s249
      %p258 = scmp.eq.s32.totalorder %s39, 0
      %p259 = por %p257, %p258
      %p260 = scmp.ne.s32.totalorder %s248, %s249
      %p261 = scmp.eq.s32.totalorder %s40, 1
      %p262 = por %p260, %p261
      %p264 = scmp.ne.s32.totalorder %s249, %s263
      %p265 = scmp.eq.s32.totalorder %s40, 0
      %p266 = por %p264, %p265
      %s268 = sadd.s32 %s267, 1
      %p271 = scmp.eq.s32.totalorder %s34, 1
      %p272 = scmp.ne.s32.totalorder %s267, %s269
      %p273 = scmp.eq.s32.totalorder %s34, 0
      %p274 = por %p272, %p273
      %p275 = scmp.ne.s32.totalorder %s267, %s269
      %p276 = scmp.eq.s32.totalorder %s39, 1
      %p277 = por %p275, %p276
      %p278 = scmp.ne.s32.totalorder %s269, %s270
      %p279 = scmp.eq.s32.totalorder %s39, 0
      %p280 = por %p278, %p279
      %p281 = scmp.ne.s32.totalorder %s269, %s270
      %p282 = scmp.eq.s32.totalorder %s40, 1
      %p283 = por %p281, %p282
      %p285 = scmp.ne.s32.totalorder %s270, %s284
      %p286 = scmp.eq.s32.totalorder %s40, 0
      %p287 = por %p285, %p286
      %s289 = sadd.s32 %s288, 1
      %p292 = scmp.eq.s32.totalorder %s34, 1
      %p293 = scmp.ne.s32.totalorder %s288, %s290
      %p294 = scmp.eq.s32.totalorder %s34, 0
      %p295 = por %p293, %p294
      %p296 = scmp.ne.s32.totalorder %s288, %s290
      %p297 = scmp.eq.s32.totalorder %s39, 1
      %p298 = por %p296, %p297
      %p299 = scmp.ne.s32.totalorder %s290, %s291
      %p300 = scmp.eq.s32.totalorder %s39, 0
      %p301 = por %p299, %p300
      %p302 = scmp.ne.s32.totalorder %s290, %s291
      %p303 = scmp.eq.s32.totalorder %s40, 1
      %p304 = por %p302, %p303
      %p306 = scmp.ne.s32.totalorder %s291, %s305
      %p307 = scmp.eq.s32.totalorder %s40, 0
      %p308 = por %p306, %p307
      %s310 = sadd.s32 %s309, 1
      %p313 = scmp.eq.s32.totalorder %s34, 1
      %p314 = scmp.ne.s32.totalorder %s309, %s311
      %p315 = scmp.eq.s32.totalorder %s34, 0
      %p316 = por %p314, %p315
      %p317 = scmp.ne.s32.totalorder %s309, %s311
      %p318 = scmp.eq.s32.totalorder %s39, 1
      %p319 = por %p317, %p318
      %p320 = scmp.ne.s32.totalorder %s311, %s312
      %p321 = scmp.eq.s32.totalorder %s39, 0
      %p322 = por %p320, %p321
      %p323 = scmp.ne.s32.totalorder %s311, %s312
      %p324 = scmp.eq.s32.totalorder %s40, 1
      %p325 = por %p323, %p324
      %p327 = scmp.ne.s32.totalorder %s312, %s326
      %p328 = scmp.eq.s32.totalorder %s40, 0
      %p329 = por %p327, %p328
      %s331 = sadd.s32 %s330, 1
      %p334 = scmp.eq.s32.totalorder %s34, 1
      %p335 = scmp.ne.s32.totalorder %s330, %s332
      %p336 = scmp.eq.s32.totalorder %s34, 0
      %p337 = por %p335, %p336
      %p338 = scmp.ne.s32.totalorder %s330, %s332
      %p339 = scmp.eq.s32.totalorder %s39, 1
      %p340 = por %p338, %p339
      %p341 = scmp.ne.s32.totalorder %s332, %s333
      %p342 = scmp.eq.s32.totalorder %s39, 0
      %p343 = por %p341, %p342
      %p344 = scmp.ne.s32.totalorder %s332, %s333
      %p345 = scmp.eq.s32.totalorder %s40, 1
      %p346 = por %p344, %p345
      %p348 = scmp.ne.s32.totalorder %s333, %s347
      %p349 = scmp.eq.s32.totalorder %s40, 0
      %p350 = por %p348, %p349
      %s352 = sadd.s32 %s351, 1
      %p355 = scmp.eq.s32.totalorder %s34, 1
      %p356 = scmp.ne.s32.totalorder %s351, %s353
      %p357 = scmp.eq.s32.totalorder %s34, 0
      %p358 = por %p356, %p357
      %p359 = scmp.ne.s32.totalorder %s351, %s353
      %p360 = scmp.eq.s32.totalorder %s39, 1
      %p361 = por %p359, %p360
      %p362 = scmp.ne.s32.totalorder %s353, %s354
      %p363 = scmp.eq.s32.totalorder %s39, 0
      %p364 = por %p362, %p363
      %p365 = scmp.ne.s32.totalorder %s353, %s354
      %p366 = scmp.eq.s32.totalorder %s40, 1
      %p367 = por %p365, %p366
      %p369 = scmp.ne.s32.totalorder %s354, %s368
      %p370 = scmp.eq.s32.totalorder %s40, 0
      %p371 = por %p369, %p370
      %s373 = sadd.s32 %s372, 1
      %p376 = scmp.eq.s32.totalorder %s34, 1
      %p377 = scmp.ne.s32.totalorder %s372, %s374
      %p378 = scmp.eq.s32.totalorder %s34, 0
      %p379 = por %p377, %p378
      %p380 = scmp.ne.s32.totalorder %s372, %s374
      %p381 = scmp.eq.s32.totalorder %s39, 1
      %p382 = por %p380, %p381
      %p383 = scmp.ne.s32.totalorder %s374, %s375
      %p384 = scmp.eq.s32.totalorder %s39, 0
      %p385 = por %p383, %p384
      %p386 = scmp.ne.s32.totalorder %s374, %s375
      %p387 = scmp.eq.s32.totalorder %s40, 1
      %p388 = por %p386, %p387
      %p390 = scmp.ne.s32.totalorder %s375, %s389
      %p391 = scmp.eq.s32.totalorder %s40, 0
      %p392 = por %p390, %p391
      %s394 = sadd.s32 %s393, 1
      %p397 = scmp.eq.s32.totalorder %s34, 1
      %p398 = scmp.ne.s32.totalorder %s393, %s395
      %p399 = scmp.eq.s32.totalorder %s34, 0
      %p400 = por %p398, %p399
      %p401 = scmp.ne.s32.totalorder %s393, %s395
      %p402 = scmp.eq.s32.totalorder %s39, 1
      %p403 = por %p401, %p402
      %p404 = scmp.ne.s32.totalorder %s395, %s396
      %p405 = scmp.eq.s32.totalorder %s39, 0
      %p406 = por %p404, %p405
      %p407 = scmp.ne.s32.totalorder %s395, %s396
      %p408 = scmp.eq.s32.totalorder %s40, 1
      %p409 = por %p407, %p408
      %p411 = scmp.ne.s32.totalorder %s396, %s410
      %p412 = scmp.eq.s32.totalorder %s40, 0
      %p413 = por %p411, %p412
      %s415 = sadd.s32 %s414, 1
      %p418 = scmp.eq.s32.totalorder %s34, 1
      %p419 = scmp.ne.s32.totalorder %s414, %s416
      %p420 = scmp.eq.s32.totalorder %s34, 0
      %p421 = por %p419, %p420
      %p422 = scmp.ne.s32.totalorder %s414, %s416
      %p423 = scmp.eq.s32.totalorder %s39, 1
      %p424 = por %p422, %p423
      %p425 = scmp.ne.s32.totalorder %s416, %s417
      %p426 = scmp.eq.s32.totalorder %s39, 0
      %p427 = por %p425, %p426
      %p428 = scmp.ne.s32.totalorder %s416, %s417
      %p429 = scmp.eq.s32.totalorder %s40, 1
      %p430 = por %p428, %p429
      %p432 = scmp.ne.s32.totalorder %s417, %s431
      %p433 = scmp.eq.s32.totalorder %s40, 0
      %p434 = por %p432, %p433
      %s436 = sadd.s32 %s435, 1
      %p439 = scmp.eq.s32.totalorder %s34, 1
      %p440 = scmp.ne.s32.totalorder %s435, %s437
      %p441 = scmp.eq.s32.totalorder %s34, 0
      %p442 = por %p440, %p441
      %p443 = scmp.ne.s32.totalorder %s435, %s437
      %p444 = scmp.eq.s32.totalorder %s39, 1
      %p445 = por %p443, %p444
      %p446 = scmp.ne.s32.totalorder %s437, %s438
      %p447 = scmp.eq.s32.totalorder %s39, 0
      %p448 = por %p446, %p447
      %p449 = scmp.ne.s32.totalorder %s437, %s438
      %p450 = scmp.eq.s32.totalorder %s40, 1
      %p451 = por %p449, %p450
      %p453 = scmp.ne.s32.totalorder %s438, %s452
      %p454 = scmp.eq.s32.totalorder %s40, 0
      %p455 = por %p453, %p454
      %s457 = sadd.s32 %s456, 1
      %p460 = scmp.eq.s32.totalorder %s34, 1
      %p461 = scmp.ne.s32.totalorder %s456, %s458
      %p462 = scmp.eq.s32.totalorder %s34, 0
      %p463 = por %p461, %p462
      %p464 = scmp.ne.s32.totalorder %s456, %s458
      %p465 = scmp.eq.s32.totalorder %s39, 1
      %p466 = por %p464, %p465
      %p467 = scmp.ne.s32.totalorder %s458, %s459
      %p468 = scmp.eq.s32.totalorder %s39, 0
      %p469 = por %p467, %p468
      %p470 = scmp.ne.s32.totalorder %s458, %s459
      %p471 = scmp.eq.s32.totalorder %s40, 1
      %p472 = por %p470, %p471
      %p474 = scmp.ne.s32.totalorder %s459, %s473
      %p475 = scmp.eq.s32.totalorder %s40, 0
      %p476 = por %p474, %p475
      %s478 = sadd.s32 %s477, 1
      %p481 = scmp.eq.s32.totalorder %s34, 1
      %p482 = scmp.ne.s32.totalorder %s477, %s479
      %p483 = scmp.eq.s32.totalorder %s34, 0
      %p484 = por %p482, %p483
      %p485 = scmp.ne.s32.totalorder %s477, %s479
      %p486 = scmp.eq.s32.totalorder %s39, 1
      %p487 = por %p485, %p486
      %p488 = scmp.ne.s32.totalorder %s479, %s480
      %p489 = scmp.eq.s32.totalorder %s39, 0
      %p490 = por %p488, %p489
      %p491 = scmp.ne.s32.totalorder %s479, %s480
      %p492 = scmp.eq.s32.totalorder %s40, 1
      %p493 = por %p491, %p492
      %p495 = scmp.ne.s32.totalorder %s480, %s494
      %p496 = scmp.eq.s32.totalorder %s40, 0
      %p497 = por %p495, %p496
      %s499 = sadd.s32 %s498, 1
      %p502 = scmp.eq.s32.totalorder %s34, 1
      %p503 = scmp.ne.s32.totalorder %s498, %s500
      %p504 = scmp.eq.s32.totalorder %s34, 0
      %p505 = por %p503, %p504
      %p506 = scmp.ne.s32.totalorder %s498, %s500
      %p507 = scmp.eq.s32.totalorder %s39, 1
      %p508 = por %p506, %p507
      %p509 = scmp.ne.s32.totalorder %s500, %s501
      %p510 = scmp.eq.s32.totalorder %s39, 0
      %p511 = por %p509, %p510
      %p512 = scmp.ne.s32.totalorder %s500, %s501
      %p513 = scmp.eq.s32.totalorder %s40, 1
      %p514 = por %p512, %p513
      %p516 = scmp.ne.s32.totalorder %s501, %s515
      %p517 = scmp.eq.s32.totalorder %s40, 0
      %p518 = por %p516, %p517
      %s520 = sadd.s32 %s519, 1
      %p523 = scmp.eq.s32.totalorder %s34, 1
      %p524 = scmp.ne.s32.totalorder %s519, %s521
      %p525 = scmp.eq.s32.totalorder %s34, 0
      %p526 = por %p524, %p525
      %p527 = scmp.ne.s32.totalorder %s519, %s521
      %p528 = scmp.eq.s32.totalorder %s39, 1
      %p529 = por %p527, %p528
      %p530 = scmp.ne.s32.totalorder %s521, %s522
      %p531 = scmp.eq.s32.totalorder %s39, 0
      %p532 = por %p530, %p531
      %p533 = scmp.ne.s32.totalorder %s521, %s522
      %p534 = scmp.eq.s32.totalorder %s40, 1
      %p535 = por %p533, %p534
      %p537 = scmp.ne.s32.totalorder %s522, %s536
      %p538 = scmp.eq.s32.totalorder %s40, 0
      %p539 = por %p537, %p538
      %s540 = ssub.s32 %s34, %s41
      %p541 = scmp.eq.s32.totalorder %s540, 0
      %s543 = sadd.s32 %s542, 1
      %s544 = scalar_select %p541, %s542, %s543
      %p547 = pneg %p541
      %p548 = scmp.eq.s32.totalorder %s34, 1
      %p549 = por %p547, %p548
      %p550 = scmp.ne.s32.totalorder %s542, %s545
      %p551 = scmp.eq.s32.totalorder %s34, 0
      %p552 = por %p550, %p551
      %p553 = scmp.ne.s32.totalorder %s542, %s545
      %p554 = scmp.eq.s32.totalorder %s39, 1
      %p555 = por %p553, %p554
      %p556 = scmp.ne.s32.totalorder %s545, %s546
      %p557 = scmp.eq.s32.totalorder %s39, 0
      %p558 = por %p556, %p557
      %p559 = scmp.ne.s32.totalorder %s545, %s546
      %p560 = scmp.eq.s32.totalorder %s40, 1
      %p561 = por %p559, %p560
      %p563 = scmp.ne.s32.totalorder %s546, %s562
      %p564 = scmp.eq.s32.totalorder %s40, 0
      %p565 = por %p563, %p564
      %p566 = scmp.le.s32.totalorder 1, %s34
      %p567 = scmp.lt.s32.totalorder %s34, 3
      %p568 = pnand %p566, %p567
      %p569 = pneg %p568
      // Predicated region
      $region9: #{_lambda_.1} parent=5 // pred_check
        _
      $region10: #{_lambda_.1} parent=5 // pred_check_branch
        %571 = sbr.rel (%p568) target = $region12
      $region11: #{_lambda_.1} parent=5 // pred_region
        %s572 = ssub.s32 %s34, 1
        // Predicated region
        $region13: #{_lambda_.1} parent=11 // pred_check
          %p573 = pneg %p133
        $region14: #{_lambda_.1} parent=11 // pred_check_branch
          %575 = sbr.rel (%p573) target = $region16
        $region15: #{_lambda_.1} parent=11 // pred_region
          _
        $region16: #{_lambda_.1} parent=11 // pred_fallthru
          _
        // Predicated region
        $region17: #{_lambda_.1} parent=11 // pred_check
          %p576 = pneg %p154
        $region18: #{_lambda_.1} parent=11 // pred_check_branch
          %578 = sbr.rel (%p576) target = $region20
        $region19: #{_lambda_.1} parent=11 // pred_region
          _
        $region20: #{_lambda_.1} parent=11 // pred_fallthru
          _
        // Predicated region
        $region21: #{_lambda_.1} parent=11 // pred_check
          %p579 = pneg %p175
        $region22: #{_lambda_.1} parent=11 // pred_check_branch
          %581 = sbr.rel (%p579) target = $region24
        $region23: #{_lambda_.1} parent=11 // pred_region
          _
        $region24: #{_lambda_.1} parent=11 // pred_fallthru
          _
        // Predicated region
        $region25: #{_lambda_.1} parent=11 // pred_check
          %p582 = pneg %p196
        $region26: #{_lambda_.1} parent=11 // pred_check_branch
          %584 = sbr.rel (%p582) target = $region28
        $region27: #{_lambda_.1} parent=11 // pred_region
          _
        $region28: #{_lambda_.1} parent=11 // pred_fallthru
          _
        // Predicated region
        $region29: #{_lambda_.1} parent=11 // pred_check
          %p585 = pneg %p217
        $region30: #{_lambda_.1} parent=11 // pred_check_branch
          %587 = sbr.rel (%p585) target = $region32
        $region31: #{_lambda_.1} parent=11 // pred_region
          %s589 = ssub.s32 2048, 2048
          %590 = vsyncadd [#allocation3], %s589
          %s591 = sshll.u32 [#allocation2], 4
          %s592 = int_to_ptr.vmem [resolvable:$true] %s591
          %597 = dma.hbm_to_vmem [thread:$0]  %s7, 2048, %s592, [#allocation3], 128, 128, 8
        $region32: #{_lambda_.1} parent=11 // pred_fallthru
          _
        // Predicated region
        $region33: #{_lambda_.1} parent=11 // pred_check
          %p598 = pneg %p238
        $region34: #{_lambda_.1} parent=11 // pred_check_branch
          %600 = sbr.rel (%p598) target = $region36
        $region35: #{_lambda_.1} parent=11 // pred_region
          _
        $region36: #{_lambda_.1} parent=11 // pred_fallthru
          _
        // Predicated region
        $region37: #{_lambda_.1} parent=11 // pred_check
          %p601 = pneg %p259
        $region38: #{_lambda_.1} parent=11 // pred_check_branch
          %603 = sbr.rel (%p601) target = $region40
        $region39: #{_lambda_.1} parent=11 // pred_region
          %s605 = ssub.s32 2048, 2048
          %606 = vsyncadd [#allocation5], %s605
          %s607 = sshll.u32 [#allocation4], 4
          %s608 = int_to_ptr.vmem [resolvable:$true] %s607
          %613 = dma.hbm_to_vmem [thread:$0]  %s9, 2048, %s608, [#allocation5], 128, 128, 8
        $region40: #{_lambda_.1} parent=11 // pred_fallthru
          _
        // Predicated region
        $region41: #{_lambda_.1} parent=11 // pred_check
          %p614 = pneg %p280
        $region42: #{_lambda_.1} parent=11 // pred_check_branch
          %616 = sbr.rel (%p614) target = $region44
        $region43: #{_lambda_.1} parent=11 // pred_region
          _
        $region44: #{_lambda_.1} parent=11 // pred_fallthru
          _
        // Predicated region
        $region45: #{_lambda_.1} parent=11 // pred_check
          %p617 = pneg %p301
        $region46: #{_lambda_.1} parent=11 // pred_check_branch
          %619 = sbr.rel (%p617) target = $region48
        $region47: #{_lambda_.1} parent=11 // pred_region
          %s621 = ssub.s32 2048, 2048
          %622 = vsyncadd [#allocation5], %s621
          %s623 = sshll.u32 [#allocation6], 4
          %s624 = int_to_ptr.vmem [resolvable:$true] %s623
          %629 = dma.hbm_to_vmem [thread:$0]  %s11, 2048, %s624, [#allocation5], 128, 128, 8
        $region48: #{_lambda_.1} parent=11 // pred_fallthru
          _
        // Predicated region
        $region49: #{_lambda_.1} parent=11 // pred_check
          %p630 = pneg %p322
        $region50: #{_lambda_.1} parent=11 // pred_check_branch
          %632 = sbr.rel (%p630) target = $region52
        $region51: #{_lambda_.1} parent=11 // pred_region
          _
        $region52: #{_lambda_.1} parent=11 // pred_fallthru
          _
        // Predicated region
        $region53: #{_lambda_.1} parent=11 // pred_check
          %p633 = pneg %p343
        $region54: #{_lambda_.1} parent=11 // pred_check_branch
          %635 = sbr.rel (%p633) target = $region56
        $region55: #{_lambda_.1} parent=11 // pred_region
          %s637 = ssub.s32 2048, 2048
          %638 = vsyncadd [#allocation8], %s637
          %s639 = sshll.u32 [#allocation7], 4
          %s640 = int_to_ptr.vmem [resolvable:$true] %s639
          %645 = dma.hbm_to_vmem [thread:$0]  %s13, 2048, %s640, [#allocation8], 128, 128, 8
        $region56: #{_lambda_.1} parent=11 // pred_fallthru
          _
        // Predicated region
        $region57: #{_lambda_.1} parent=11 // pred_check
          %p646 = pneg %p364
        $region58: #{_lambda_.1} parent=11 // pred_check_branch
          %648 = sbr.rel (%p646) target = $region60
        $region59: #{_lambda_.1} parent=11 // pred_region
          _
        $region60: #{_lambda_.1} parent=11 // pred_fallthru
          _
        // Predicated region
        $region61: #{_lambda_.1} parent=11 // pred_check
          %p649 = pneg %p385
        $region62: #{_lambda_.1} parent=11 // pred_check_branch
          %651 = sbr.rel (%p649) target = $region64
        $region63: #{_lambda_.1} parent=11 // pred_region
          %s653 = ssub.s32 2048, 2048
          %654 = vsyncadd [#allocation8], %s653
          %s655 = sshll.u32 [#allocation9], 4
          %s656 = int_to_ptr.vmem [resolvable:$true] %s655
          %661 = dma.hbm_to_vmem [thread:$0]  %s15, 2048, %s656, [#allocation8], 128, 128, 8
        $region64: #{_lambda_.1} parent=11 // pred_fallthru
          _
        // Predicated region
        $region65: #{_lambda_.1} parent=11 // pred_check
          %p662 = pneg %p406
        $region66: #{_lambda_.1} parent=11 // pred_check_branch
          %664 = sbr.rel (%p662) target = $region68
        $region67: #{_lambda_.1} parent=11 // pred_region
          _
        $region68: #{_lambda_.1} parent=11 // pred_fallthru
          _
        // Predicated region
        $region69: #{_lambda_.1} parent=11 // pred_check
          %p665 = pneg %p427
        $region70: #{_lambda_.1} parent=11 // pred_check_branch
          %667 = sbr.rel (%p665) target = $region72
        $region71: #{_lambda_.1} parent=11 // pred_region
          %s669 = ssub.s32 2048, 2048
          %670 = vsyncadd [#allocation11], %s669
          %s671 = sshll.u32 [#allocation10], 4
          %s672 = int_to_ptr.vmem [resolvable:$true] %s671
          %677 = dma.hbm_to_vmem [thread:$0]  %s17, 2048, %s672, [#allocation11], 128, 128, 8
        $region72: #{_lambda_.1} parent=11 // pred_fallthru
          _
        // Predicated region
        $region73: #{_lambda_.1} parent=11 // pred_check
          %p678 = pneg %p448
        $region74: #{_lambda_.1} parent=11 // pred_check_branch
          %680 = sbr.rel (%p678) target = $region76
        $region75: #{_lambda_.1} parent=11 // pred_region
          _
        $region76: #{_lambda_.1} parent=11 // pred_fallthru
          _
        // Predicated region
        $region77: #{_lambda_.1} parent=11 // pred_check
          %p681 = pneg %p469
        $region78: #{_lambda_.1} parent=11 // pred_check_branch
          %683 = sbr.rel (%p681) target = $region80
        $region79: #{_lambda_.1} parent=11 // pred_region
          %s685 = ssub.s32 2048, 2048
          %686 = vsyncadd [#allocation11], %s685
          %s687 = sshll.u32 [#allocation12], 4
          %s688 = int_to_ptr.vmem [resolvable:$true] %s687
          %693 = dma.hbm_to_vmem [thread:$0]  %s19, 2048, %s688, [#allocation11], 128, 128, 8
        $region80: #{_lambda_.1} parent=11 // pred_fallthru
          _
        // Predicated region
        $region81: #{_lambda_.1} parent=11 // pred_check
          %p694 = pneg %p490
        $region82: #{_lambda_.1} parent=11 // pred_check_branch
          %696 = sbr.rel (%p694) target = $region84
        $region83: #{_lambda_.1} parent=11 // pred_region
          _
        $region84: #{_lambda_.1} parent=11 // pred_fallthru
          _
        // Predicated region
        $region85: #{_lambda_.1} parent=11 // pred_check
          %p697 = pneg %p511
        $region86: #{_lambda_.1} parent=11 // pred_check_branch
          %699 = sbr.rel (%p697) target = $region88
        $region87: #{_lambda_.1} parent=11 // pred_region
          %s701 = ssub.s32 2048, 2048
          %702 = vsyncadd [#allocation14], %s701
          %s703 = sshll.u32 [#allocation13], 4
          %s704 = int_to_ptr.vmem [resolvable:$true] %s703
          %709 = dma.hbm_to_vmem [thread:$0]  %s21, 2048, %s704, [#allocation14], 128, 128, 8
        $region88: #{_lambda_.1} parent=11 // pred_fallthru
          _
        // Predicated region
        $region89: #{_lambda_.1} parent=11 // pred_check
          %p710 = pneg %p532
        $region90: #{_lambda_.1} parent=11 // pred_check_branch
          %712 = sbr.rel (%p710) target = $region92
        $region91: #{_lambda_.1} parent=11 // pred_region
          _
        $region92: #{_lambda_.1} parent=11 // pred_fallthru
          _
      $region12: #{_lambda_.1} parent=5 // pred_fallthru
        _
      %p713 = scmp.lt.s32.totalorder %s34, 2
      // Predicated region
      $region93: #{_lambda_.1} parent=5 // pred_check
        %p714 = pneg %p713
      $region94: #{_lambda_.1} parent=5 // pred_check_branch
        %716 = sbr.rel (%p714) target = $region96
      $region95: #{_lambda_.1} parent=5 // pred_region
        // Predicated region
        $region97: #{_lambda_.1} parent=95 // pred_check
          %p717 = pneg %p54
        $region98: #{_lambda_.1} parent=95 // pred_check_branch
          %719 = sbr.rel (%p717) target = $region100
        $region99: #{_lambda_.1} parent=95 // pred_region
          %p720 = scmp.lt.s32.totalorder %s34, 1
          %s721 = scalar_select %p720, %s34, 1
          %s722 = smul.addr %s721, 8
          %s723 = scalar_lea.vmem %s0, %s722
        $region100: #{_lambda_.1} parent=95 // pred_fallthru
          _
        // Predicated region
        $region101: #{_lambda_.1} parent=95 // pred_check
          %p724 = pneg %p80
        $region102: #{_lambda_.1} parent=95 // pred_check_branch
          %726 = sbr.rel (%p724) target = $region104
        $region103: #{_lambda_.1} parent=95 // pred_region
          %p727 = scmp.lt.s32.totalorder %s34, 1
          %s728 = scalar_select %p727, %s34, 1
          %s729 = smul.addr %s728, 8
          %s730 = scalar_lea.vmem %s1, %s729
        $region104: #{_lambda_.1} parent=95 // pred_fallthru
          _
        // Predicated region
        $region105: #{_lambda_.1} parent=95 // pred_check
          %p731 = pneg %p106
        $region106: #{_lambda_.1} parent=95 // pred_check_branch
          %733 = sbr.rel (%p731) target = $region108
        $region107: #{_lambda_.1} parent=95 // pred_region
          %p734 = scmp.lt.s32.totalorder %s34, 1
          %s735 = scalar_select %p734, %s34, 1
          %s736 = smul.addr %s735, 8
          %s737 = scalar_lea.vmem %s2, %s736
        $region108: #{_lambda_.1} parent=95 // pred_fallthru
          _
      $region96: #{_lambda_.1} parent=5 // pred_fallthru
        _
      %p738 = scmp.le.s32.totalorder 1, %s34
      %p739 = scmp.lt.s32.totalorder %s34, 3
      %p740 = pnand %p738, %p739
      %p741 = pneg %p740
      // Predicated region
      $region109: #{_lambda_.1} parent=5 // pred_check
        _
      $region110: #{_lambda_.1} parent=5 // pred_check_branch
        %743 = sbr.rel (%p740) target = $region112
      $region111: #{_lambda_.1} parent=5 // pred_region
        %s744 = ssub.s32 %s34, 1
        // Predicated region
        $region113: #{_lambda_.1} parent=111 // pred_check
          %p745 = pneg %p217
        $region114: #{_lambda_.1} parent=111 // pred_check_branch
          %747 = sbr.rel (%p745) target = $region116
        $region115: #{_lambda_.1} parent=111 // pred_region
          %748 = dma.done [#allocation3], 2048
        $region116: #{_lambda_.1} parent=111 // pred_fallthru
          _
        // Predicated region
        $region117: #{_lambda_.1} parent=111 // pred_check
          %p749 = pneg %p259
        $region118: #{_lambda_.1} parent=111 // pred_check_branch
          %751 = sbr.rel (%p749) target = $region120
        $region119: #{_lambda_.1} parent=111 // pred_region
          %752 = dma.done [#allocation5], 2048
        $region120: #{_lambda_.1} parent=111 // pred_fallthru
          _
        // Predicated region
        $region121: #{_lambda_.1} parent=111 // pred_check
          %p753 = pneg %p301
        $region122: #{_lambda_.1} parent=111 // pred_check_branch
          %755 = sbr.rel (%p753) target = $region124
        $region123: #{_lambda_.1} parent=111 // pred_region
          %756 = dma.done [#allocation5], 2048
        $region124: #{_lambda_.1} parent=111 // pred_fallthru
          _
        // Predicated region
        $region125: #{_lambda_.1} parent=111 // pred_check
          %p757 = pneg %p343
        $region126: #{_lambda_.1} parent=111 // pred_check_branch
          %759 = sbr.rel (%p757) target = $region128
        $region127: #{_lambda_.1} parent=111 // pred_region
          %760 = dma.done [#allocation8], 2048
        $region128: #{_lambda_.1} parent=111 // pred_fallthru
          _
        // Predicated region
        $region129: #{_lambda_.1} parent=111 // pred_check
          %p761 = pneg %p385
        $region130: #{_lambda_.1} parent=111 // pred_check_branch
          %763 = sbr.rel (%p761) target = $region132
        $region131: #{_lambda_.1} parent=111 // pred_region
          %764 = dma.done [#allocation8], 2048
        $region132: #{_lambda_.1} parent=111 // pred_fallthru
          _
        // Predicated region
        $region133: #{_lambda_.1} parent=111 // pred_check
          %p765 = pneg %p427
        $region134: #{_lambda_.1} parent=111 // pred_check_branch
          %767 = sbr.rel (%p765) target = $region136
        $region135: #{_lambda_.1} parent=111 // pred_region
          %768 = dma.done [#allocation11], 2048
        $region136: #{_lambda_.1} parent=111 // pred_fallthru
          _
        // Predicated region
        $region137: #{_lambda_.1} parent=111 // pred_check
          %p769 = pneg %p469
        $region138: #{_lambda_.1} parent=111 // pred_check_branch
          %771 = sbr.rel (%p769) target = $region140
        $region139: #{_lambda_.1} parent=111 // pred_region
          %772 = dma.done [#allocation11], 2048
        $region140: #{_lambda_.1} parent=111 // pred_fallthru
          _
        // Predicated region
        $region141: #{_lambda_.1} parent=111 // pred_check
          %p773 = pneg %p511
        $region142: #{_lambda_.1} parent=111 // pred_check_branch
          %775 = sbr.rel (%p773) target = $region144
        $region143: #{_lambda_.1} parent=111 // pred_region
          %776 = dma.done [#allocation14], 2048
        $region144: #{_lambda_.1} parent=111 // pred_fallthru
          _
        %p777 = scmp.lt.s32.totalorder %s39, 1
        %s778 = scalar_select %p777, %s39, 1
        %s779 = smul.addr %s778, 8
        %s780 = scalar_lea.vmem %s0, %s779
        %p781 = pneg %p60
        %p782 = pneg %p57
        %p783 = scmp.lt.s32.totalorder %s39, 1
        %s784 = scalar_select %p783, %s39, 1
        %s785 = smul.addr %s784, 8
        %s786 = scalar_lea.vmem %s1, %s785
        %p787 = pneg %p86
        %p788 = pneg %p83
        %p789 = scmp.lt.s32.totalorder %s39, 1
        %s790 = scalar_select %p789, %s39, 1
        %s791 = smul.addr %s790, 8
        %s792 = scalar_lea.vmem %s2, %s791
        %p793 = pneg %p112
        %p794 = pneg %p109
        %p795 = pneg %p133
        %p796 = pneg %p130
        %p797 = pneg %p154
        %p798 = pneg %p151
        %p799 = pneg %p175
        %p800 = pneg %p172
        %p801 = pneg %p196
        %p802 = pneg %p193
        %p803 = pneg %p217
        %p804 = pneg %p214
        %p805 = pneg %p238
        %p806 = pneg %p235
        %p807 = pneg %p259
        %p808 = pneg %p256
        %p809 = pneg %p280
        %p810 = pneg %p277
        %p811 = pneg %p301
        %p812 = pneg %p298
        %p813 = pneg %p322
        %p814 = pneg %p319
        %p815 = pneg %p343
        %p816 = pneg %p340
        %p817 = pneg %p364
        %p818 = pneg %p361
        %p819 = pneg %p385
        %p820 = pneg %p382
        %p821 = pneg %p406
        %p822 = pneg %p403
        %p823 = pneg %p427
        %p824 = pneg %p424
        %p825 = pneg %p448
        %p826 = pneg %p445
        %p827 = pneg %p469
        %p828 = pneg %p466
        %p829 = pneg %p490
        %p830 = pneg %p487
        %p831 = pneg %p511
        %p832 = pneg %p508
        %p833 = pneg %p532
        %p834 = pneg %p529
        %p835 = pneg %p558
        %p836 = pneg %p555
        %p837 = scmp.lt.s32.totalorder %s39, 1
        %s838 = scalar_select %p837, %s39, 1
        %s839 = smul.addr %s838, 8
        %s840 = scalar_lea.vmem %s23, %s839
        %p841 = scmp.lt.s32.totalorder %s39, 1
        %s842 = scalar_select %p841, %s39, 1
        %s843 = smul.addr %s842, 8
        %s844 = scalar_lea.vmem %s0, %s843
        %p845 = scmp.lt.s32.totalorder %s39, 1
        %s846 = scalar_select %p845, %s39, 1
        %s847 = smul.addr %s846, 8
        %s848 = scalar_lea.vmem %s1, %s847
        %p849 = scmp.lt.s32.totalorder %s39, 1
        %s850 = scalar_select %p849, %s39, 1
        %s851 = smul.addr %s850, 8
        %s852 = scalar_lea.vmem %s2, %s851
        %p853 = scmp.lt.s32.totalorder %s39, 1
        %s854 = scalar_select %p853, %s39, 1
        %s855 = smul.addr %s854, 8
        %s856 = scalar_lea.vmem %s23, %s855
        %v857 = vld [vmem:[%s844] sm:$0xff]
        %v858 = vld [vmem:[%s5] sm:$0xff]
        %v859 = vld [vmem:[%s5 + $0x8] sm:$0xff]
        %v860 = vld [vmem:[%s5 + $0x10] sm:$0xff]
        %v861 = vld [vmem:[%s5 + $0x18] sm:$0xff]
        %v862 = vld [vmem:[%s5 + $0x20] sm:$0xff]
        %v863 = vld [vmem:[%s5 + $0x28] sm:$0xff]
        %v864 = vld [vmem:[%s5 + $0x30] sm:$0xff]
        %v865 = vld [vmem:[%s5 + $0x38] sm:$0xff]
        %v866 = vld [vmem:[%s5 + $0x40] sm:$0xff]
        %v867 = vld [vmem:[%s5 + $0x48] sm:$0xff]
        %v868 = vld [vmem:[%s5 + $0x50] sm:$0xff]
        %v869 = vld [vmem:[%s5 + $0x58] sm:$0xff]
        %v870 = vld [vmem:[%s5 + $0x60] sm:$0xff]
        %v871 = vld [vmem:[%s5 + $0x68] sm:$0xff]
        %v872 = vld [vmem:[%s5 + $0x70] sm:$0xff]
        %v873 = vld [vmem:[%s5 + $0x78] sm:$0xff]
        %v874 = vld [vmem:[%s6] sm:$0x1]
        %v876 = vlaneseq
        %v877 = vshrl.u32 %v876, 7
        %v878 = vsub.s32 0, %v877
        %v879 = vrot.slane %v874, %v878
        %881 = vmatprep.subr.mxu0 0.0
        %882 = vmatpush1.msra.mxu0 %v858
        %883 = vmatprep.subr.mxu0 0.0
        %884 = vmatpush1.msra.mxu0 %v859
        %885 = vmatprep.subr.mxu0 0.0
        %886 = vmatpush1.msra.mxu0 %v860
        %887 = vmatprep.subr.mxu0 0.0
        %888 = vmatpush1.msra.mxu0 %v861
        %889 = vmatprep.subr.mxu0 0.0
        %890 = vmatpush1.msra.mxu0 %v862
        %891 = vmatprep.subr.mxu0 0.0
        %892 = vmatpush1.msra.mxu0 %v863
        %893 = vmatprep.subr.mxu0 0.0
        %894 = vmatpush1.msra.mxu0 %v864
        %895 = vmatprep.subr.mxu0 0.0
        %896 = vmatpush1.msra.mxu0 %v865
        %897 = vmatprep.subr.mxu0 0.0
        %898 = vmatpush1.msra.mxu0 %v866
        %899 = vmatprep.subr.mxu0 0.0
        %900 = vmatpush1.msra.mxu0 %v867
        %901 = vmatprep.subr.mxu0 0.0
        %902 = vmatpush1.msra.mxu0 %v868
        %903 = vmatprep.subr.mxu0 0.0
        %904 = vmatpush1.msra.mxu0 %v869
        %905 = vmatprep.subr.mxu0 0.0
        %906 = vmatpush1.msra.mxu0 %v870
        %907 = vmatprep.subr.mxu0 0.0
        %908 = vmatpush1.msra.mxu0 %v871
        %909 = vmatprep.subr.mxu0 0.0
        %910 = vmatpush1.msra.mxu0 %v872
        %911 = vmatprep.subr.mxu0 0.0
        %912 = vmatpush1.msra.mxu0 %v873
        %913 = vmatprep.subr.mxu0 0.0
        %914 = vmatpush1.msra.mxu0 0.0
        %915 = vmatprep.subr.mxu0 0.0
        %916 = vmatpush1.msra.mxu0 0.0
        %917 = vmatprep.subr.mxu0 0.0
        %918 = vmatpush1.msra.mxu0 0.0
        %919 = vmatprep.subr.mxu0 0.0
        %920 = vmatpush1.msra.mxu0 0.0
        %921 = vmatprep.subr.mxu0 0.0
        %922 = vmatpush1.msra.mxu0 0.0
        %923 = vmatprep.subr.mxu0 0.0
        %924 = vmatpush1.msra.mxu0 0.0
        %925 = vmatprep.subr.mxu0 0.0
        %926 = vmatpush1.msra.mxu0 0.0
        %927 = vmatprep.subr.mxu0 0.0
        %928 = vmatpush1.msra.mxu0 0.0
        %929 = vmatprep.subr.mxu0 0.0
        %930 = vmatpush1.msra.mxu0 0.0
        %931 = vmatprep.subr.mxu0 0.0
        %932 = vmatpush1.msra.mxu0 0.0
        %933 = vmatprep.subr.mxu0 0.0
        %934 = vmatpush1.msra.mxu0 0.0
        %935 = vmatprep.subr.mxu0 0.0
        %936 = vmatpush1.msra.mxu0 0.0
        %937 = vmatprep.subr.mxu0 0.0
        %938 = vmatpush1.msra.mxu0 0.0
        %939 = vmatprep.subr.mxu0 0.0
        %940 = vmatpush1.msra.mxu0 0.0
        %941 = vmatprep.subr.mxu0 0.0
        %942 = vmatpush1.msra.mxu0 0.0
        %943 = vmatprep.subr.mxu0 0.0
        %944 = vmatpush1.msra.mxu0 0.0
        %945 = vmatprep.mubr.f32.mxu0 0.0
        %946 = vmatmul.mubr.f32.gmra.mrb[0].mxu0 %v857
        %v947 = vpop.f32.mrb[0].mxu0
        %v948 = vadd.f32 %v879, %v947
        %v949 = vpop.f32.mrb[0].mxu0
        %950 = vdwg.mxu0
        %vm951 = vcmp.gt.f32.partialorder %v948, 0.0
        %v952 = vmul.f32 %v948, 1.442695
        %v953 = vpow.pop %v952
        %v954 = vsub.f32 %v953, 1.0
        %v955 = vmul.f32 %v954, 1.6732632
        %v956 = vsel %vm951, %v948, %v955
        %v957 = vmul.f32 %v956, 1.050701
        %v958 = vld [vmem:[#allocation2] sm:$0xff]
        %v959 = vld [vmem:[#allocation2 + $0x8] sm:$0xff]
        %v960 = vld [vmem:[#allocation2 + $0x10] sm:$0xff]
        %v961 = vld [vmem:[#allocation2 + $0x18] sm:$0xff]
        %v962 = vld [vmem:[#allocation2 + $0x20] sm:$0xff]
        %v963 = vld [vmem:[#allocation2 + $0x28] sm:$0xff]
        %v964 = vld [vmem:[#allocation2 + $0x30] sm:$0xff]
        %v965 = vld [vmem:[#allocation2 + $0x38] sm:$0xff]
        %v966 = vld [vmem:[#allocation2 + $0x40] sm:$0xff]
        %v967 = vld [vmem:[#allocation2 + $0x48] sm:$0xff]
        %v968 = vld [vmem:[#allocation2 + $0x50] sm:$0xff]
        %v969 = vld [vmem:[#allocation2 + $0x58] sm:$0xff]
        %v970 = vld [vmem:[#allocation2 + $0x60] sm:$0xff]
        %v971 = vld [vmem:[#allocation2 + $0x68] sm:$0xff]
        %v972 = vld [vmem:[#allocation2 + $0x70] sm:$0xff]
        %v973 = vld [vmem:[#allocation2 + $0x78] sm:$0xff]
        %v974 = vld [vmem:[%s8] sm:$0x1]
        %v976 = vlaneseq
        %v977 = vshrl.u32 %v976, 7
        %v978 = vsub.s32 0, %v977
        %v979 = vrot.slane %v974, %v978
        %981 = vmatprep.subr.mxu0 0.0
        %982 = vmatpush1.msra.mxu0 %v958
        %983 = vmatprep.subr.mxu0 0.0
        %984 = vmatpush1.msra.mxu0 %v959
        %985 = vmatprep.subr.mxu0 0.0
        %986 = vmatpush1.msra.mxu0 %v960
        %987 = vmatprep.subr.mxu0 0.0
        %988 = vmatpush1.msra.mxu0 %v961
        %989 = vmatprep.subr.mxu0 0.0
        %990 = vmatpush1.msra.mxu0 %v962
        %991 = vmatprep.subr.mxu0 0.0
        %992 = vmatpush1.msra.mxu0 %v963
        %993 = vmatprep.subr.mxu0 0.0
        %994 = vmatpush1.msra.mxu0 %v964
        %995 = vmatprep.subr.mxu0 0.0
        %996 = vmatpush1.msra.mxu0 %v965
        %997 = vmatprep.subr.mxu0 0.0
        %998 = vmatpush1.msra.mxu0 %v966
        %999 = vmatprep.subr.mxu0 0.0
        %1000 = vmatpush1.msra.mxu0 %v967
        %1001 = vmatprep.subr.mxu0 0.0
        %1002 = vmatpush1.msra.mxu0 %v968
        %1003 = vmatprep.subr.mxu0 0.0
        %1004 = vmatpush1.msra.mxu0 %v969
        %1005 = vmatprep.subr.mxu0 0.0
        %1006 = vmatpush1.msra.mxu0 %v970
        %1007 = vmatprep.subr.mxu0 0.0
        %1008 = vmatpush1.msra.mxu0 %v971
        %1009 = vmatprep.subr.mxu0 0.0
        %1010 = vmatpush1.msra.mxu0 %v972
        %1011 = vmatprep.subr.mxu0 0.0
        %1012 = vmatpush1.msra.mxu0 %v973
        %1013 = vmatprep.subr.mxu0 0.0
        %1014 = vmatpush1.msra.mxu0 0.0
        %1015 = vmatprep.subr.mxu0 0.0
        %1016 = vmatpush1.msra.mxu0 0.0
        %1017 = vmatprep.subr.mxu0 0.0
        %1018 = vmatpush1.msra.mxu0 0.0
        %1019 = vmatprep.subr.mxu0 0.0
        %1020 = vmatpush1.msra.mxu0 0.0
        %1021 = vmatprep.subr.mxu0 0.0
        %1022 = vmatpush1.msra.mxu0 0.0
        %1023 = vmatprep.subr.mxu0 0.0
        %1024 = vmatpush1.msra.mxu0 0.0
        %1025 = vmatprep.subr.mxu0 0.0
        %1026 = vmatpush1.msra.mxu0 0.0
        %1027 = vmatprep.subr.mxu0 0.0
        %1028 = vmatpush1.msra.mxu0 0.0
        %1029 = vmatprep.subr.mxu0 0.0
        %1030 = vmatpush1.msra.mxu0 0.0
        %1031 = vmatprep.subr.mxu0 0.0
        %1032 = vmatpush1.msra.mxu0 0.0
        %1033 = vmatprep.subr.mxu0 0.0
        %1034 = vmatpush1.msra.mxu0 0.0
        %1035 = vmatprep.subr.mxu0 0.0
        %1036 = vmatpush1.msra.mxu0 0.0
        %1037 = vmatprep.subr.mxu0 0.0
        %1038 = vmatpush1.msra.mxu0 0.0
        %1039 = vmatprep.subr.mxu0 0.0
        %1040 = vmatpush1.msra.mxu0 0.0
        %1041 = vmatprep.subr.mxu0 0.0
        %1042 = vmatpush1.msra.mxu0 0.0
        %1043 = vmatprep.subr.mxu0 0.0
        %1044 = vmatpush1.msra.mxu0 0.0
        %1045 = vmatprep.mubr.f32.mxu0 0.0
        %1046 = vmatmul.mubr.f32.gmra.mrb[0].mxu0 %v957
        %v1047 = vpop.f32.mrb[0].mxu0
        %v1048 = vadd.f32 %v979, %v1047
        %v1049 = vpop.f32.mrb[0].mxu0
        %1050 = vdwg.mxu0
        %vm1051 = vcmp.gt.f32.partialorder %v1048, 0.0
        %v1052 = vmul.f32 %v1048, 1.442695
        %v1053 = vpow.pop %v1052
        %v1054 = vsub.f32 %v1053, 1.0
        %v1055 = vmul.f32 %v1054, 1.6732632
        %v1056 = vsel %vm1051, %v1048, %v1055
        %v1057 = vmul.f32 %v1056, 1.050701
        %v1058 = vld [vmem:[#allocation4] sm:$0xff]
        %v1059 = vld [vmem:[#allocation4 + $0x8] sm:$0xff]
        %v1060 = vld [vmem:[#allocation4 + $0x10] sm:$0xff]
        %v1061 = vld [vmem:[#allocation4 + $0x18] sm:$0xff]
        %v1062 = vld [vmem:[#allocation4 + $0x20] sm:$0xff]
        %v1063 = vld [vmem:[#allocation4 + $0x28] sm:$0xff]
        %v1064 = vld [vmem:[#allocation4 + $0x30] sm:$0xff]
        %v1065 = vld [vmem:[#allocation4 + $0x38] sm:$0xff]
        %v1066 = vld [vmem:[#allocation4 + $0x40] sm:$0xff]
        %v1067 = vld [vmem:[#allocation4 + $0x48] sm:$0xff]
        %v1068 = vld [vmem:[#allocation4 + $0x50] sm:$0xff]
        %v1069 = vld [vmem:[#allocation4 + $0x58] sm:$0xff]
        %v1070 = vld [vmem:[#allocation4 + $0x60] sm:$0xff]
        %v1071 = vld [vmem:[#allocation4 + $0x68] sm:$0xff]
        %v1072 = vld [vmem:[#allocation4 + $0x70] sm:$0xff]
        %v1073 = vld [vmem:[#allocation4 + $0x78] sm:$0xff]
        %v1074 = vld [vmem:[%s10] sm:$0x1]
        %v1076 = vlaneseq
        %v1077 = vshrl.u32 %v1076, 7
        %v1078 = vsub.s32 0, %v1077
        %v1079 = vrot.slane %v1074, %v1078
        %1081 = vmatprep.subr.mxu0 0.0
        %1082 = vmatpush1.msra.mxu0 %v1058
        %1083 = vmatprep.subr.mxu0 0.0
        %1084 = vmatpush1.msra.mxu0 %v1059
        %1085 = vmatprep.subr.mxu0 0.0
        %1086 = vmatpush1.msra.mxu0 %v1060
        %1087 = vmatprep.subr.mxu0 0.0
        %1088 = vmatpush1.msra.mxu0 %v1061
        %1089 = vmatprep.subr.mxu0 0.0
        %1090 = vmatpush1.msra.mxu0 %v1062
        %1091 = vmatprep.subr.mxu0 0.0
        %1092 = vmatpush1.msra.mxu0 %v1063
        %1093 = vmatprep.subr.mxu0 0.0
        %1094 = vmatpush1.msra.mxu0 %v1064
        %1095 = vmatprep.subr.mxu0 0.0
        %1096 = vmatpush1.msra.mxu0 %v1065
        %1097 = vmatprep.subr.mxu0 0.0
        %1098 = vmatpush1.msra.mxu0 %v1066
        %1099 = vmatprep.subr.mxu0 0.0
        %1100 = vmatpush1.msra.mxu0 %v1067
        %1101 = vmatprep.subr.mxu0 0.0
        %1102 = vmatpush1.msra.mxu0 %v1068
        %1103 = vmatprep.subr.mxu0 0.0
        %1104 = vmatpush1.msra.mxu0 %v1069
        %1105 = vmatprep.subr.mxu0 0.0
        %1106 = vmatpush1.msra.mxu0 %v1070
        %1107 = vmatprep.subr.mxu0 0.0
        %1108 = vmatpush1.msra.mxu0 %v1071
        %1109 = vmatprep.subr.mxu0 0.0
        %1110 = vmatpush1.msra.mxu0 %v1072
        %1111 = vmatprep.subr.mxu0 0.0
        %1112 = vmatpush1.msra.mxu0 %v1073
        %1113 = vmatprep.subr.mxu0 0.0
        %1114 = vmatpush1.msra.mxu0 0.0
        %1115 = vmatprep.subr.mxu0 0.0
        %1116 = vmatpush1.msra.mxu0 0.0
        %1117 = vmatprep.subr.mxu0 0.0
        %1118 = vmatpush1.msra.mxu0 0.0
        %1119 = vmatprep.subr.mxu0 0.0
        %1120 = vmatpush1.msra.mxu0 0.0
        %1121 = vmatprep.subr.mxu0 0.0
        %1122 = vmatpush1.msra.mxu0 0.0
        %1123 = vmatprep.subr.mxu0 0.0
        %1124 = vmatpush1.msra.mxu0 0.0
        %1125 = vmatprep.subr.mxu0 0.0
        %1126 = vmatpush1.msra.mxu0 0.0
        %1127 = vmatprep.subr.mxu0 0.0
        %1128 = vmatpush1.msra.mxu0 0.0
        %1129 = vmatprep.subr.mxu0 0.0
        %1130 = vmatpush1.msra.mxu0 0.0
        %1131 = vmatprep.subr.mxu0 0.0
        %1132 = vmatpush1.msra.mxu0 0.0
        %1133 = vmatprep.subr.mxu0 0.0
        %1134 = vmatpush1.msra.mxu0 0.0
        %1135 = vmatprep.subr.mxu0 0.0
        %1136 = vmatpush1.msra.mxu0 0.0
        %1137 = vmatprep.subr.mxu0 0.0
        %1138 = vmatpush1.msra.mxu0 0.0
        %1139 = vmatprep.subr.mxu0 0.0
        %1140 = vmatpush1.msra.mxu0 0.0
        %1141 = vmatprep.subr.mxu0 0.0
        %1142 = vmatpush1.msra.mxu0 0.0
        %1143 = vmatprep.subr.mxu0 0.0
        %1144 = vmatpush1.msra.mxu0 0.0
        %1145 = vmatprep.mubr.f32.mxu0 0.0
        %1146 = vmatmul.mubr.f32.gmra.mrb[0].mxu0 %v1057
        %v1147 = vpop.f32.mrb[0].mxu0
        %v1148 = vadd.f32 %v1079, %v1147
        %v1149 = vpop.f32.mrb[0].mxu0
        %1150 = vdwg.mxu0
        %vm1151 = vcmp.gt.f32.partialorder %v1148, 0.0
        %v1152 = vmul.f32 %v1148, 1.442695
        %v1153 = vpow.pop %v1152
        %v1154 = vsub.f32 %v1153, 1.0
        %v1155 = vmul.f32 %v1154, 1.6732632
        %v1156 = vsel %vm1151, %v1148, %v1155
        %v1157 = vmul.f32 %v1156, 1.050701
        %v1158 = vld [vmem:[#allocation6] sm:$0xff]
        %v1159 = vld [vmem:[#allocation6 + $0x8] sm:$0xff]
        %v1160 = vld [vmem:[#allocation6 + $0x10] sm:$0xff]
        %v1161 = vld [vmem:[#allocation6 + $0x18] sm:$0xff]
        %v1162 = vld [vmem:[#allocation6 + $0x20] sm:$0xff]
        %v1163 = vld [vmem:[#allocation6 + $0x28] sm:$0xff]
        %v1164 = vld [vmem:[#allocation6 + $0x30] sm:$0xff]
        %v1165 = vld [vmem:[#allocation6 + $0x38] sm:$0xff]
        %v1166 = vld [vmem:[#allocation6 + $0x40] sm:$0xff]
        %v1167 = vld [vmem:[#allocation6 + $0x48] sm:$0xff]
        %v1168 = vld [vmem:[#allocation6 + $0x50] sm:$0xff]
        %v1169 = vld [vmem:[#allocation6 + $0x58] sm:$0xff]
        %v1170 = vld [vmem:[#allocation6 + $0x60] sm:$0xff]
        %v1171 = vld [vmem:[#allocation6 + $0x68] sm:$0xff]
        %v1172 = vld [vmem:[#allocation6 + $0x70] sm:$0xff]
        %v1173 = vld [vmem:[#allocation6 + $0x78] sm:$0xff]
        %v1174 = vld [vmem:[%s12] sm:$0x1]
        %v1176 = vlaneseq
        %v1177 = vshrl.u32 %v1176, 7
        %v1178 = vsub.s32 0, %v1177
        %v1179 = vrot.slane %v1174, %v1178
        %1181 = vmatprep.subr.mxu0 0.0
        %1182 = vmatpush1.msra.mxu0 %v1158
        %1183 = vmatprep.subr.mxu0 0.0
        %1184 = vmatpush1.msra.mxu0 %v1159
        %1185 = vmatprep.subr.mxu0 0.0
        %1186 = vmatpush1.msra.mxu0 %v1160
        %1187 = vmatprep.subr.mxu0 0.0
        %1188 = vmatpush1.msra.mxu0 %v1161
        %1189 = vmatprep.subr.mxu0 0.0
        %1190 = vmatpush1.msra.mxu0 %v1162
        %1191 = vmatprep.subr.mxu0 0.0
        %1192 = vmatpush1.msra.mxu0 %v1163
        %1193 = vmatprep.subr.mxu0 0.0
        %1194 = vmatpush1.msra.mxu0 %v1164
        %1195 = vmatprep.subr.mxu0 0.0
        %1196 = vmatpush1.msra.mxu0 %v1165
        %1197 = vmatprep.subr.mxu0 0.0
        %1198 = vmatpush1.msra.mxu0 %v1166
        %1199 = vmatprep.subr.mxu0 0.0
        %1200 = vmatpush1.msra.mxu0 %v1167
        %1201 = vmatprep.subr.mxu0 0.0
        %1202 = vmatpush1.msra.mxu0 %v1168
        %1203 = vmatprep.subr.mxu0 0.0
        %1204 = vmatpush1.msra.mxu0 %v1169
        %1205 = vmatprep.subr.mxu0 0.0
        %1206 = vmatpush1.msra.mxu0 %v1170
        %1207 = vmatprep.subr.mxu0 0.0
        %1208 = vmatpush1.msra.mxu0 %v1171
        %1209 = vmatprep.subr.mxu0 0.0
        %1210 = vmatpush1.msra.mxu0 %v1172
        %1211 = vmatprep.subr.mxu0 0.0
        %1212 = vmatpush1.msra.mxu0 %v1173
        %1213 = vmatprep.subr.mxu0 0.0
        %1214 = vmatpush1.msra.mxu0 0.0
        %1215 = vmatprep.subr.mxu0 0.0
        %1216 = vmatpush1.msra.mxu0 0.0
        %1217 = vmatprep.subr.mxu0 0.0
        %1218 = vmatpush1.msra.mxu0 0.0
        %1219 = vmatprep.subr.mxu0 0.0
        %1220 = vmatpush1.msra.mxu0 0.0
        %1221 = vmatprep.subr.mxu0 0.0
        %1222 = vmatpush1.msra.mxu0 0.0
        %1223 = vmatprep.subr.mxu0 0.0
        %1224 = vmatpush1.msra.mxu0 0.0
        %1225 = vmatprep.subr.mxu0 0.0
        %1226 = vmatpush1.msra.mxu0 0.0
        %1227 = vmatprep.subr.mxu0 0.0
        %1228 = vmatpush1.msra.mxu0 0.0
        %1229 = vmatprep.subr.mxu0 0.0
        %1230 = vmatpush1.msra.mxu0 0.0
        %1231 = vmatprep.subr.mxu0 0.0
        %1232 = vmatpush1.msra.mxu0 0.0
        %1233 = vmatprep.subr.mxu0 0.0
        %1234 = vmatpush1.msra.mxu0 0.0
        %1235 = vmatprep.subr.mxu0 0.0
        %1236 = vmatpush1.msra.mxu0 0.0
        %1237 = vmatprep.subr.mxu0 0.0
        %1238 = vmatpush1.msra.mxu0 0.0
        %1239 = vmatprep.subr.mxu0 0.0
        %1240 = vmatpush1.msra.mxu0 0.0
        %1241 = vmatprep.subr.mxu0 0.0
        %1242 = vmatpush1.msra.mxu0 0.0
        %1243 = vmatprep.subr.mxu0 0.0
        %1244 = vmatpush1.msra.mxu0 0.0
        %1245 = vmatprep.mubr.f32.mxu0 0.0
        %1246 = vmatmul.mubr.f32.gmra.mrb[0].mxu0 %v1157
        %v1247 = vpop.f32.mrb[0].mxu0
        %v1248 = vadd.f32 %v1179, %v1247
        %v1249 = vpop.f32.mrb[0].mxu0
        %1250 = vdwg.mxu0
        %vm1251 = vcmp.gt.f32.partialorder %v1248, 0.0
        %v1252 = vmul.f32 %v1248, 1.442695
        %v1253 = vpow.pop %v1252
        %v1254 = vsub.f32 %v1253, 1.0
        %v1255 = vmul.f32 %v1254, 1.6732632
        %v1256 = vsel %vm1251, %v1248, %v1255
        %v1257 = vmul.f32 %v1256, 1.050701
        %v1258 = vld [vmem:[#allocation7] sm:$0xff]
        %v1259 = vld [vmem:[#allocation7 + $0x8] sm:$0xff]
        %v1260 = vld [vmem:[#allocation7 + $0x10] sm:$0xff]
        %v1261 = vld [vmem:[#allocation7 + $0x18] sm:$0xff]
        %v1262 = vld [vmem:[#allocation7 + $0x20] sm:$0xff]
        %v1263 = vld [vmem:[#allocation7 + $0x28] sm:$0xff]
        %v1264 = vld [vmem:[#allocation7 + $0x30] sm:$0xff]
        %v1265 = vld [vmem:[#allocation7 + $0x38] sm:$0xff]
        %v1266 = vld [vmem:[#allocation7 + $0x40] sm:$0xff]
        %v1267 = vld [vmem:[#allocation7 + $0x48] sm:$0xff]
        %v1268 = vld [vmem:[#allocation7 + $0x50] sm:$0xff]
        %v1269 = vld [vmem:[#allocation7 + $0x58] sm:$0xff]
        %v1270 = vld [vmem:[#allocation7 + $0x60] sm:$0xff]
        %v1271 = vld [vmem:[#allocation7 + $0x68] sm:$0xff]
        %v1272 = vld [vmem:[#allocation7 + $0x70] sm:$0xff]
        %v1273 = vld [vmem:[#allocation7 + $0x78] sm:$0xff]
        %v1274 = vld [vmem:[%s14] sm:$0x1]
        %v1276 = vlaneseq
        %v1277 = vshrl.u32 %v1276, 7
        %v1278 = vsub.s32 0, %v1277
        %v1279 = vrot.slane %v1274, %v1278
        %1281 = vmatprep.subr.mxu0 0.0
        %1282 = vmatpush1.msra.mxu0 %v1258
        %1283 = vmatprep.subr.mxu0 0.0
        %1284 = vmatpush1.msra.mxu0 %v1259
        %1285 = vmatprep.subr.mxu0 0.0
        %1286 = vmatpush1.msra.mxu0 %v1260
        %1287 = vmatprep.subr.mxu0 0.0
        %1288 = vmatpush1.msra.mxu0 %v1261
        %1289 = vmatprep.subr.mxu0 0.0
        %1290 = vmatpush1.msra.mxu0 %v1262
        %1291 = vmatprep.subr.mxu0 0.0
        %1292 = vmatpush1.msra.mxu0 %v1263
        %1293 = vmatprep.subr.mxu0 0.0
        %1294 = vmatpush1.msra.mxu0 %v1264
        %1295 = vmatprep.subr.mxu0 0.0
        %1296 = vmatpush1.msra.mxu0 %v1265
        %1297 = vmatprep.subr.mxu0 0.0
        %1298 = vmatpush1.msra.mxu0 %v1266
        %1299 = vmatprep.subr.mxu0 0.0
        %1300 = vmatpush1.msra.mxu0 %v1267
        %1301 = vmatprep.subr.mxu0 0.0
        %1302 = vmatpush1.msra.mxu0 %v1268
        %1303 = vmatprep.subr.mxu0 0.0
        %1304 = vmatpush1.msra.mxu0 %v1269
        %1305 = vmatprep.subr.mxu0 0.0
        %1306 = vmatpush1.msra.mxu0 %v1270
        %1307 = vmatprep.subr.mxu0 0.0
        %1308 = vmatpush1.msra.mxu0 %v1271
        %1309 = vmatprep.subr.mxu0 0.0
        %1310 = vmatpush1.msra.mxu0 %v1272
        %1311 = vmatprep.subr.mxu0 0.0
        %1312 = vmatpush1.msra.mxu0 %v1273
        %1313 = vmatprep.subr.mxu0 0.0
        %1314 = vmatpush1.msra.mxu0 0.0
        %1315 = vmatprep.subr.mxu0 0.0
        %1316 = vmatpush1.msra.mxu0 0.0
        %1317 = vmatprep.subr.mxu0 0.0
        %1318 = vmatpush1.msra.mxu0 0.0
        %1319 = vmatprep.subr.mxu0 0.0
        %1320 = vmatpush1.msra.mxu0 0.0
        %1321 = vmatprep.subr.mxu0 0.0
        %1322 = vmatpush1.msra.mxu0 0.0
        %1323 = vmatprep.subr.mxu0 0.0
        %1324 = vmatpush1.msra.mxu0 0.0
        %1325 = vmatprep.subr.mxu0 0.0
        %1326 = vmatpush1.msra.mxu0 0.0
        %1327 = vmatprep.subr.mxu0 0.0
        %1328 = vmatpush1.msra.mxu0 0.0
        %1329 = vmatprep.subr.mxu0 0.0
        %1330 = vmatpush1.msra.mxu0 0.0
        %1331 = vmatprep.subr.mxu0 0.0
        %1332 = vmatpush1.msra.mxu0 0.0
        %1333 = vmatprep.subr.mxu0 0.0
        %1334 = vmatpush1.msra.mxu0 0.0
        %1335 = vmatprep.subr.mxu0 0.0
        %1336 = vmatpush1.msra.mxu0 0.0
        %1337 = vmatprep.subr.mxu0 0.0
        %1338 = vmatpush1.msra.mxu0 0.0
        %1339 = vmatprep.subr.mxu0 0.0
        %1340 = vmatpush1.msra.mxu0 0.0
        %1341 = vmatprep.subr.mxu0 0.0
        %1342 = vmatpush1.msra.mxu0 0.0
        %1343 = vmatprep.subr.mxu0 0.0
        %1344 = vmatpush1.msra.mxu0 0.0
        %1345 = vmatprep.mubr.f32.mxu0 0.0
        %1346 = vmatmul.mubr.f32.gmra.mrb[0].mxu0 %v1257
        %v1347 = vpop.f32.mrb[0].mxu0
        %v1348 = vadd.f32 %v1279, %v1347
        %v1349 = vpop.f32.mrb[0].mxu0
        %1350 = vdwg.mxu0
        %vm1351 = vcmp.gt.f32.partialorder %v1348, 0.0
        %v1352 = vmul.f32 %v1348, 1.442695
        %v1353 = vpow.pop %v1352
        %v1354 = vsub.f32 %v1353, 1.0
        %v1355 = vmul.f32 %v1354, 1.6732632
        %v1356 = vsel %vm1351, %v1348, %v1355
        %v1357 = vmul.f32 %v1356, 1.050701
        %v1358 = vld [vmem:[#allocation9] sm:$0xff]
        %v1359 = vld [vmem:[#allocation9 + $0x8] sm:$0xff]
        %v1360 = vld [vmem:[#allocation9 + $0x10] sm:$0xff]
        %v1361 = vld [vmem:[#allocation9 + $0x18] sm:$0xff]
        %v1362 = vld [vmem:[#allocation9 + $0x20] sm:$0xff]
        %v1363 = vld [vmem:[#allocation9 + $0x28] sm:$0xff]
        %v1364 = vld [vmem:[#allocation9 + $0x30] sm:$0xff]
        %v1365 = vld [vmem:[#allocation9 + $0x38] sm:$0xff]
        %v1366 = vld [vmem:[#allocation9 + $0x40] sm:$0xff]
        %v1367 = vld [vmem:[#allocation9 + $0x48] sm:$0xff]
        %v1368 = vld [vmem:[#allocation9 + $0x50] sm:$0xff]
        %v1369 = vld [vmem:[#allocation9 + $0x58] sm:$0xff]
        %v1370 = vld [vmem:[#allocation9 + $0x60] sm:$0xff]
        %v1371 = vld [vmem:[#allocation9 + $0x68] sm:$0xff]
        %v1372 = vld [vmem:[#allocation9 + $0x70] sm:$0xff]
        %v1373 = vld [vmem:[#allocation9 + $0x78] sm:$0xff]
        %v1374 = vld [vmem:[%s16] sm:$0x1]
        %v1376 = vlaneseq
        %v1377 = vshrl.u32 %v1376, 7
        %v1378 = vsub.s32 0, %v1377
        %v1379 = vrot.slane %v1374, %v1378
        %1381 = vmatprep.subr.mxu0 0.0
        %1382 = vmatpush1.msra.mxu0 %v1358
        %1383 = vmatprep.subr.mxu0 0.0
        %1384 = vmatpush1.msra.mxu0 %v1359
        %1385 = vmatprep.subr.mxu0 0.0
        %1386 = vmatpush1.msra.mxu0 %v1360
        %1387 = vmatprep.subr.mxu0 0.0
        %1388 = vmatpush1.msra.mxu0 %v1361
        %1389 = vmatprep.subr.mxu0 0.0
        %1390 = vmatpush1.msra.mxu0 %v1362
        %1391 = vmatprep.subr.mxu0 0.0
        %1392 = vmatpush1.msra.mxu0 %v1363
        %1393 = vmatprep.subr.mxu0 0.0
        %1394 = vmatpush1.msra.mxu0 %v1364
        %1395 = vmatprep.subr.mxu0 0.0
        %1396 = vmatpush1.msra.mxu0 %v1365
        %1397 = vmatprep.subr.mxu0 0.0
        %1398 = vmatpush1.msra.mxu0 %v1366
        %1399 = vmatprep.subr.mxu0 0.0
        %1400 = vmatpush1.msra.mxu0 %v1367
        %1401 = vmatprep.subr.mxu0 0.0
        %1402 = vmatpush1.msra.mxu0 %v1368
        %1403 = vmatprep.subr.mxu0 0.0
        %1404 = vmatpush1.msra.mxu0 %v1369
        %1405 = vmatprep.subr.mxu0 0.0
        %1406 = vmatpush1.msra.mxu0 %v1370
        %1407 = vmatprep.subr.mxu0 0.0
        %1408 = vmatpush1.msra.mxu0 %v1371
        %1409 = vmatprep.subr.mxu0 0.0
        %1410 = vmatpush1.msra.mxu0 %v1372
        %1411 = vmatprep.subr.mxu0 0.0
        %1412 = vmatpush1.msra.mxu0 %v1373
        %1413 = vmatprep.subr.mxu0 0.0
        %1414 = vmatpush1.msra.mxu0 0.0
        %1415 = vmatprep.subr.mxu0 0.0
        %1416 = vmatpush1.msra.mxu0 0.0
        %1417 = vmatprep.subr.mxu0 0.0
        %1418 = vmatpush1.msra.mxu0 0.0
        %1419 = vmatprep.subr.mxu0 0.0
        %1420 = vmatpush1.msra.mxu0 0.0
        %1421 = vmatprep.subr.mxu0 0.0
        %1422 = vmatpush1.msra.mxu0 0.0
        %1423 = vmatprep.subr.mxu0 0.0
        %1424 = vmatpush1.msra.mxu0 0.0
        %1425 = vmatprep.subr.mxu0 0.0
        %1426 = vmatpush1.msra.mxu0 0.0
        %1427 = vmatprep.subr.mxu0 0.0
        %1428 = vmatpush1.msra.mxu0 0.0
        %1429 = vmatprep.subr.mxu0 0.0
        %1430 = vmatpush1.msra.mxu0 0.0
        %1431 = vmatprep.subr.mxu0 0.0
        %1432 = vmatpush1.msra.mxu0 0.0
        %1433 = vmatprep.subr.mxu0 0.0
        %1434 = vmatpush1.msra.mxu0 0.0
        %1435 = vmatprep.subr.mxu0 0.0
        %1436 = vmatpush1.msra.mxu0 0.0
        %1437 = vmatprep.subr.mxu0 0.0
        %1438 = vmatpush1.msra.mxu0 0.0
        %1439 = vmatprep.subr.mxu0 0.0
        %1440 = vmatpush1.msra.mxu0 0.0
        %1441 = vmatprep.subr.mxu0 0.0
        %1442 = vmatpush1.msra.mxu0 0.0
        %1443 = vmatprep.subr.mxu0 0.0
        %1444 = vmatpush1.msra.mxu0 0.0
        %1445 = vmatprep.mubr.f32.mxu0 0.0
        %1446 = vmatmul.mubr.f32.gmra.mrb[0].mxu0 %v1357
        %v1447 = vpop.f32.mrb[0].mxu0
        %v1448 = vadd.f32 %v1379, %v1447
        %v1449 = vpop.f32.mrb[0].mxu0
        %1450 = vdwg.mxu0
        %v1451 = vld [vmem:[%s848] sm:$0xff]
        %v1452 = vld [vmem:[#allocation10] sm:$0xff]
        %v1453 = vld [vmem:[#allocation10 + $0x8] sm:$0xff]
        %v1454 = vld [vmem:[#allocation10 + $0x10] sm:$0xff]
        %v1455 = vld [vmem:[#allocation10 + $0x18] sm:$0xff]
        %v1456 = vld [vmem:[#allocation10 + $0x20] sm:$0xff]
        %v1457 = vld [vmem:[#allocation10 + $0x28] sm:$0xff]
        %v1458 = vld [vmem:[#allocation10 + $0x30] sm:$0xff]
        %v1459 = vld [vmem:[#allocation10 + $0x38] sm:$0xff]
        %v1460 = vld [vmem:[#allocation10 + $0x40] sm:$0xff]
        %v1461 = vld [vmem:[#allocation10 + $0x48] sm:$0xff]
        %v1462 = vld [vmem:[#allocation10 + $0x50] sm:$0xff]
        %v1463 = vld [vmem:[#allocation10 + $0x58] sm:$0xff]
        %v1464 = vld [vmem:[#allocation10 + $0x60] sm:$0xff]
        %v1465 = vld [vmem:[#allocation10 + $0x68] sm:$0xff]
        %v1466 = vld [vmem:[#allocation10 + $0x70] sm:$0xff]
        %v1467 = vld [vmem:[#allocation10 + $0x78] sm:$0xff]
        %v1468 = vld [vmem:[%s18] sm:$0x1]
        %v1470 = vlaneseq
        %v1471 = vshrl.u32 %v1470, 7
        %v1472 = vsub.s32 0, %v1471
        %v1473 = vrot.slane %v1468, %v1472
        %1475 = vmatprep.subr.mxu0 0.0
        %1476 = vmatpush1.msra.mxu0 %v1452
        %1477 = vmatprep.subr.mxu0 0.0
        %1478 = vmatpush1.msra.mxu0 %v1453
        %1479 = vmatprep.subr.mxu0 0.0
        %1480 = vmatpush1.msra.mxu0 %v1454
        %1481 = vmatprep.subr.mxu0 0.0
        %1482 = vmatpush1.msra.mxu0 %v1455
        %1483 = vmatprep.subr.mxu0 0.0
        %1484 = vmatpush1.msra.mxu0 %v1456
        %1485 = vmatprep.subr.mxu0 0.0
        %1486 = vmatpush1.msra.mxu0 %v1457
        %1487 = vmatprep.subr.mxu0 0.0
        %1488 = vmatpush1.msra.mxu0 %v1458
        %1489 = vmatprep.subr.mxu0 0.0
        %1490 = vmatpush1.msra.mxu0 %v1459
        %1491 = vmatprep.subr.mxu0 0.0
        %1492 = vmatpush1.msra.mxu0 %v1460
        %1493 = vmatprep.subr.mxu0 0.0
        %1494 = vmatpush1.msra.mxu0 %v1461
        %1495 = vmatprep.subr.mxu0 0.0
        %1496 = vmatpush1.msra.mxu0 %v1462
        %1497 = vmatprep.subr.mxu0 0.0
        %1498 = vmatpush1.msra.mxu0 %v1463
        %1499 = vmatprep.subr.mxu0 0.0
        %1500 = vmatpush1.msra.mxu0 %v1464
        %1501 = vmatprep.subr.mxu0 0.0
        %1502 = vmatpush1.msra.mxu0 %v1465
        %1503 = vmatprep.subr.mxu0 0.0
        %1504 = vmatpush1.msra.mxu0 %v1466
        %1505 = vmatprep.subr.mxu0 0.0
        %1506 = vmatpush1.msra.mxu0 %v1467
        %1507 = vmatprep.subr.mxu0 0.0
        %1508 = vmatpush1.msra.mxu0 0.0
        %1509 = vmatprep.subr.mxu0 0.0
        %1510 = vmatpush1.msra.mxu0 0.0
        %1511 = vmatprep.subr.mxu0 0.0
        %1512 = vmatpush1.msra.mxu0 0.0
        %1513 = vmatprep.subr.mxu0 0.0
        %1514 = vmatpush1.msra.mxu0 0.0
        %1515 = vmatprep.subr.mxu0 0.0
        %1516 = vmatpush1.msra.mxu0 0.0
        %1517 = vmatprep.subr.mxu0 0.0
        %1518 = vmatpush1.msra.mxu0 0.0
        %1519 = vmatprep.subr.mxu0 0.0
        %1520 = vmatpush1.msra.mxu0 0.0
        %1521 = vmatprep.subr.mxu0 0.0
        %1522 = vmatpush1.msra.mxu0 0.0
        %1523 = vmatprep.subr.mxu0 0.0
        %1524 = vmatpush1.msra.mxu0 0.0
        %1525 = vmatprep.subr.mxu0 0.0
        %1526 = vmatpush1.msra.mxu0 0.0
        %1527 = vmatprep.subr.mxu0 0.0
        %1528 = vmatpush1.msra.mxu0 0.0
        %1529 = vmatprep.subr.mxu0 0.0
        %1530 = vmatpush1.msra.mxu0 0.0
        %1531 = vmatprep.subr.mxu0 0.0
        %1532 = vmatpush1.msra.mxu0 0.0
        %1533 = vmatprep.subr.mxu0 0.0
        %1534 = vmatpush1.msra.mxu0 0.0
        %1535 = vmatprep.subr.mxu0 0.0
        %1536 = vmatpush1.msra.mxu0 0.0
        %1537 = vmatprep.subr.mxu0 0.0
        %1538 = vmatpush1.msra.mxu0 0.0
        %1539 = vmatprep.mubr.f32.mxu0 0.0
        %1540 = vmatmul.mubr.f32.gmra.mrb[0].mxu0 %v1451
        %v1541 = vpop.f32.mrb[0].mxu0
        %v1542 = vadd.f32 %v1473, %v1541
        %v1543 = vpop.f32.mrb[0].mxu0
        %1544 = vdwg.mxu0
        %vm1545 = vcmp.gt.f32.partialorder %v1542, 0.0
        %v1546 = vmul.f32 %v1542, 1.442695
        %v1547 = vpow.pop %v1546
        %v1548 = vsub.f32 %v1547, 1.0
        %v1549 = vmul.f32 %v1548, 1.6732632
        %v1550 = vsel %vm1545, %v1542, %v1549
        %v1551 = vmul.f32 %v1550, 1.050701
        %v1552 = vld [vmem:[#allocation12] sm:$0xff]
        %v1553 = vld [vmem:[#allocation12 + $0x8] sm:$0xff]
        %v1554 = vld [vmem:[#allocation12 + $0x10] sm:$0xff]
        %v1555 = vld [vmem:[#allocation12 + $0x18] sm:$0xff]
        %v1556 = vld [vmem:[#allocation12 + $0x20] sm:$0xff]
        %v1557 = vld [vmem:[#allocation12 + $0x28] sm:$0xff]
        %v1558 = vld [vmem:[#allocation12 + $0x30] sm:$0xff]
        %v1559 = vld [vmem:[#allocation12 + $0x38] sm:$0xff]
        %v1560 = vld [vmem:[#allocation12 + $0x40] sm:$0xff]
        %v1561 = vld [vmem:[#allocation12 + $0x48] sm:$0xff]
        %v1562 = vld [vmem:[#allocation12 + $0x50] sm:$0xff]
        %v1563 = vld [vmem:[#allocation12 + $0x58] sm:$0xff]
        %v1564 = vld [vmem:[#allocation12 + $0x60] sm:$0xff]
        %v1565 = vld [vmem:[#allocation12 + $0x68] sm:$0xff]
        %v1566 = vld [vmem:[#allocation12 + $0x70] sm:$0xff]
        %v1567 = vld [vmem:[#allocation12 + $0x78] sm:$0xff]
        %v1568 = vld [vmem:[%s20] sm:$0x1]
        %v1570 = vlaneseq
        %v1571 = vshrl.u32 %v1570, 7
        %v1572 = vsub.s32 0, %v1571
        %v1573 = vrot.slane %v1568, %v1572
        %1575 = vmatprep.subr.mxu0 0.0
        %1576 = vmatpush1.msra.mxu0 %v1552
        %1577 = vmatprep.subr.mxu0 0.0
        %1578 = vmatpush1.msra.mxu0 %v1553
        %1579 = vmatprep.subr.mxu0 0.0
        %1580 = vmatpush1.msra.mxu0 %v1554
        %1581 = vmatprep.subr.mxu0 0.0
        %1582 = vmatpush1.msra.mxu0 %v1555
        %1583 = vmatprep.subr.mxu0 0.0
        %1584 = vmatpush1.msra.mxu0 %v1556
        %1585 = vmatprep.subr.mxu0 0.0
        %1586 = vmatpush1.msra.mxu0 %v1557
        %1587 = vmatprep.subr.mxu0 0.0
        %1588 = vmatpush1.msra.mxu0 %v1558
        %1589 = vmatprep.subr.mxu0 0.0
        %1590 = vmatpush1.msra.mxu0 %v1559
        %1591 = vmatprep.subr.mxu0 0.0
        %1592 = vmatpush1.msra.mxu0 %v1560
        %1593 = vmatprep.subr.mxu0 0.0
        %1594 = vmatpush1.msra.mxu0 %v1561
        %1595 = vmatprep.subr.mxu0 0.0
        %1596 = vmatpush1.msra.mxu0 %v1562
        %1597 = vmatprep.subr.mxu0 0.0
        %1598 = vmatpush1.msra.mxu0 %v1563
        %1599 = vmatprep.subr.mxu0 0.0
        %1600 = vmatpush1.msra.mxu0 %v1564
        %1601 = vmatprep.subr.mxu0 0.0
        %1602 = vmatpush1.msra.mxu0 %v1565
        %1603 = vmatprep.subr.mxu0 0.0
        %1604 = vmatpush1.msra.mxu0 %v1566
        %1605 = vmatprep.subr.mxu0 0.0
        %1606 = vmatpush1.msra.mxu0 %v1567
        %1607 = vmatprep.subr.mxu0 0.0
        %1608 = vmatpush1.msra.mxu0 0.0
        %1609 = vmatprep.subr.mxu0 0.0
        %1610 = vmatpush1.msra.mxu0 0.0
        %1611 = vmatprep.subr.mxu0 0.0
        %1612 = vmatpush1.msra.mxu0 0.0
        %1613 = vmatprep.subr.mxu0 0.0
        %1614 = vmatpush1.msra.mxu0 0.0
        %1615 = vmatprep.subr.mxu0 0.0
        %1616 = vmatpush1.msra.mxu0 0.0
        %1617 = vmatprep.subr.mxu0 0.0
        %1618 = vmatpush1.msra.mxu0 0.0
        %1619 = vmatprep.subr.mxu0 0.0
        %1620 = vmatpush1.msra.mxu0 0.0
        %1621 = vmatprep.subr.mxu0 0.0
        %1622 = vmatpush1.msra.mxu0 0.0
        %1623 = vmatprep.subr.mxu0 0.0
        %1624 = vmatpush1.msra.mxu0 0.0
        %1625 = vmatprep.subr.mxu0 0.0
        %1626 = vmatpush1.msra.mxu0 0.0
        %1627 = vmatprep.subr.mxu0 0.0
        %1628 = vmatpush1.msra.mxu0 0.0
        %1629 = vmatprep.subr.mxu0 0.0
        %1630 = vmatpush1.msra.mxu0 0.0
        %1631 = vmatprep.subr.mxu0 0.0
        %1632 = vmatpush1.msra.mxu0 0.0
        %1633 = vmatprep.subr.mxu0 0.0
        %1634 = vmatpush1.msra.mxu0 0.0
        %1635 = vmatprep.subr.mxu0 0.0
        %1636 = vmatpush1.msra.mxu0 0.0
        %1637 = vmatprep.subr.mxu0 0.0
        %1638 = vmatpush1.msra.mxu0 0.0
        %1639 = vmatprep.mubr.f32.mxu0 0.0
        %1640 = vmatmul.mubr.f32.gmra.mrb[0].mxu0 %v1551
        %v1641 = vpop.f32.mrb[0].mxu0
        %v1642 = vadd.f32 %v1573, %v1641
        %v1643 = vpop.f32.mrb[0].mxu0
        %1644 = vdwg.mxu0
        %vm1645 = vcmp.gt.f32.partialorder %v1642, 0.0
        %v1646 = vmul.f32 %v1642, 1.442695
        %v1647 = vpow.pop %v1646
        %v1648 = vsub.f32 %v1647, 1.0
        %v1649 = vmul.f32 %v1648, 1.6732632
        %v1650 = vsel %vm1645, %v1642, %v1649
        %v1651 = vmul.f32 %v1650, 1.050701
        %v1652 = vld [vmem:[#allocation13] sm:$0xff]
        %v1653 = vld [vmem:[#allocation13 + $0x8] sm:$0xff]
        %v1654 = vld [vmem:[#allocation13 + $0x10] sm:$0xff]
        %v1655 = vld [vmem:[#allocation13 + $0x18] sm:$0xff]
        %v1656 = vld [vmem:[#allocation13 + $0x20] sm:$0xff]
        %v1657 = vld [vmem:[#allocation13 + $0x28] sm:$0xff]
        %v1658 = vld [vmem:[#allocation13 + $0x30] sm:$0xff]
        %v1659 = vld [vmem:[#allocation13 + $0x38] sm:$0xff]
        %v1660 = vld [vmem:[#allocation13 + $0x40] sm:$0xff]
        %v1661 = vld [vmem:[#allocation13 + $0x48] sm:$0xff]
        %v1662 = vld [vmem:[#allocation13 + $0x50] sm:$0xff]
        %v1663 = vld [vmem:[#allocation13 + $0x58] sm:$0xff]
        %v1664 = vld [vmem:[#allocation13 + $0x60] sm:$0xff]
        %v1665 = vld [vmem:[#allocation13 + $0x68] sm:$0xff]
        %v1666 = vld [vmem:[#allocation13 + $0x70] sm:$0xff]
        %v1667 = vld [vmem:[#allocation13 + $0x78] sm:$0xff]
        %v1668 = vld [vmem:[%s22] sm:$0x1]
        %v1670 = vlaneseq
        %v1671 = vshrl.u32 %v1670, 7
        %v1672 = vsub.s32 0, %v1671
        %v1673 = vrot.slane %v1668, %v1672
        %1675 = vmatprep.subr.mxu0 0.0
        %1676 = vmatpush1.msra.mxu0 %v1652
        %1677 = vmatprep.subr.mxu0 0.0
        %1678 = vmatpush1.msra.mxu0 %v1653
        %1679 = vmatprep.subr.mxu0 0.0
        %1680 = vmatpush1.msra.mxu0 %v1654
        %1681 = vmatprep.subr.mxu0 0.0
        %1682 = vmatpush1.msra.mxu0 %v1655
        %1683 = vmatprep.subr.mxu0 0.0
        %1684 = vmatpush1.msra.mxu0 %v1656
        %1685 = vmatprep.subr.mxu0 0.0
        %1686 = vmatpush1.msra.mxu0 %v1657
        %1687 = vmatprep.subr.mxu0 0.0
        %1688 = vmatpush1.msra.mxu0 %v1658
        %1689 = vmatprep.subr.mxu0 0.0
        %1690 = vmatpush1.msra.mxu0 %v1659
        %1691 = vmatprep.subr.mxu0 0.0
        %1692 = vmatpush1.msra.mxu0 %v1660
        %1693 = vmatprep.subr.mxu0 0.0
        %1694 = vmatpush1.msra.mxu0 %v1661
        %1695 = vmatprep.subr.mxu0 0.0
        %1696 = vmatpush1.msra.mxu0 %v1662
        %1697 = vmatprep.subr.mxu0 0.0
        %1698 = vmatpush1.msra.mxu0 %v1663
        %1699 = vmatprep.subr.mxu0 0.0
        %1700 = vmatpush1.msra.mxu0 %v1664
        %1701 = vmatprep.subr.mxu0 0.0
        %1702 = vmatpush1.msra.mxu0 %v1665
        %1703 = vmatprep.subr.mxu0 0.0
        %1704 = vmatpush1.msra.mxu0 %v1666
        %1705 = vmatprep.subr.mxu0 0.0
        %1706 = vmatpush1.msra.mxu0 %v1667
        %1707 = vmatprep.subr.mxu0 0.0
        %1708 = vmatpush1.msra.mxu0 0.0
        %1709 = vmatprep.subr.mxu0 0.0
        %1710 = vmatpush1.msra.mxu0 0.0
        %1711 = vmatprep.subr.mxu0 0.0
        %1712 = vmatpush1.msra.mxu0 0.0
        %1713 = vmatprep.subr.mxu0 0.0
        %1714 = vmatpush1.msra.mxu0 0.0
        %1715 = vmatprep.subr.mxu0 0.0
        %1716 = vmatpush1.msra.mxu0 0.0
        %1717 = vmatprep.subr.mxu0 0.0
        %1718 = vmatpush1.msra.mxu0 0.0
        %1719 = vmatprep.subr.mxu0 0.0
        %1720 = vmatpush1.msra.mxu0 0.0
        %1721 = vmatprep.subr.mxu0 0.0
        %1722 = vmatpush1.msra.mxu0 0.0
        %1723 = vmatprep.subr.mxu0 0.0
        %1724 = vmatpush1.msra.mxu0 0.0
        %1725 = vmatprep.subr.mxu0 0.0
        %1726 = vmatpush1.msra.mxu0 0.0
        %1727 = vmatprep.subr.mxu0 0.0
        %1728 = vmatpush1.msra.mxu0 0.0
        %1729 = vmatprep.subr.mxu0 0.0
        %1730 = vmatpush1.msra.mxu0 0.0
        %1731 = vmatprep.subr.mxu0 0.0
        %1732 = vmatpush1.msra.mxu0 0.0
        %1733 = vmatprep.subr.mxu0 0.0
        %1734 = vmatpush1.msra.mxu0 0.0
        %1735 = vmatprep.subr.mxu0 0.0
        %1736 = vmatpush1.msra.mxu0 0.0
        %1737 = vmatprep.subr.mxu0 0.0
        %1738 = vmatpush1.msra.mxu0 0.0
        %1739 = vmatprep.mubr.f32.mxu0 0.0
        %1740 = vmatmul.mubr.f32.gmra.mrb[0].mxu0 %v1651
        %v1741 = vpop.f32.mrb[0].mxu0
        %v1742 = vadd.f32 %v1673, %v1741
        %v1743 = vpop.f32.mrb[0].mxu0
        %1744 = vdwg.mxu0
        %v1745 = vld [vmem:[%s852] sm:$0xff]
        %v1746 = vsub.f32 %v1745, %v1448
        %v1747 = vld [vmem:[%s3] sm:$0x1]
        %v1749 = vlaneseq
        %v1750 = vshrl.u32 %v1749, 7
        %v1751 = vsub.s32 0, %v1750
        %v1752 = vrot.slane %v1747, %v1751
        %v1754 = vmul.f32 %v1746, %v1752
        %v1755 = vmul.f32 %v1754, %v1754
        %1756 = vadd.xlane.f32.xlu0 %v1755
        %v1757 = vpop.xlane.xlu0 %1756
        %v1758 = vadd.f32 %v1448, %v1742
        %v1759 = vld [vmem:[%s4] sm:$0x1]
        %v1761 = vlaneseq
        %v1762 = vshrl.u32 %v1761, 7
        %v1763 = vsub.s32 0, %v1762
        %v1764 = vrot.slane %v1759, %v1763
        %v1766 = vmul.f32 %v1757, %v1764
        %v1767 = vadd.f32 %v1758, %v1766
        %1768 = vst [vmem:[%s856] sm:$0xff] %v1767
        %p1769 = scmp.lt.s32.totalorder %s39, 1
        %s1770 = scalar_select %p1769, %s39, 1
        %s1771 = smul.addr %s1770, 8
        %s1772 = scalar_lea.vmem %s23, %s1771
        // Predicated region
        $region145: #{_lambda_.1} parent=111 // pred_check
          %p1773 = pneg %p555
        $region146: #{_lambda_.1} parent=111 // pred_check_branch
          %1775 = sbr.rel (%p1773) target = $region148
        $region147: #{_lambda_.1} parent=111 // pred_region
          _
        $region148: #{_lambda_.1} parent=111 // pred_fallthru
          _
      $region112: #{_lambda_.1} parent=5 // pred_fallthru
        _
      %p1776 = scmp.le.s32.totalorder 2, %s34
      // Predicated region
      $region149: #{_lambda_.1} parent=5 // pred_check
        %p1777 = pneg %p1776
      $region150: #{_lambda_.1} parent=5 // pred_check_branch
        %1779 = sbr.rel (%p1777) target = $region152
      $region151: #{_lambda_.1} parent=5 // pred_region
        %s1780 = ssub.s32 %s34, 2
        // Predicated region
        $region153: #{_lambda_.1} parent=151 // pred_check
          %p1781 = pneg %p561
        $region154: #{_lambda_.1} parent=151 // pred_check_branch
          %1783 = sbr.rel (%p1781) target = $region156
        $region155: #{_lambda_.1} parent=151 // pred_region
          %p1784 = scmp.lt.s32.totalorder %s40, 1
          %s1785 = scalar_select %p1784, %s40, 1
          %s1786 = smul.addr %s1785, 8
          %s1787 = scalar_lea.vmem %s23, %s1786
        $region156: #{_lambda_.1} parent=151 // pred_fallthru
          _
      $region152: #{_lambda_.1} parent=5 // pred_fallthru
        _
    $region6: #{_lambda_.1} parent=1 // loop_footer
      %s38 = sadd.s32 1, %s34
    $region7: #{_lambda_.1} parent=1 // loop_footer_branch
      %33 = sbr.rel target = $region3
    $region8: #{_lambda_.1} parent=1 // loop_exit
      _
    %1788 = vsyncpa [#allocation3], 1
    %s1789 = scalar_lea.sflag [#allocation3], 1
    %1790 = vsyncpa %s1789, 1
    %1791 = vsyncpa [#allocation5], 1
    %1792 = vsyncpa [#allocation8], 1
    %1793 = vsyncpa [#allocation11], 1
    %1794 = vsyncpa [#allocation14], 1

</llo_original>
